<compile_context>
chip_gen: v7x
topology: tpu7x:2x2x1
jax: 0.10.0
libtpu: 0.0.40
codegen_flags: <defaults>
</compile_context>

<pallas_src>
import jax
import jax.numpy as jnp
import numpy as np
from jax.experimental import pallas as pl
from jax.experimental.pallas import tpu as pltpu


def _silu(v):
    return v * jax.nn.sigmoid(v)


def _round_up(v, m):
    return ((v + m - 1) // m) * m


def _pick_vmem_limit():
    try:
        cap = pltpu.get_tpu_info().vmem_capacity_bytes
    except Exception:
        cap = 64 * 1024 * 1024  # conservative fallback (fits every generation)
    return int(min(100 * 1024 * 1024, cap * 3 // 4))


# -----------------------------------------------------------------------------
# Host-side edge bucketing: sort by receiver, pack each node tile's edges into
# whole blocks of tile_e (>= 1 block per node tile, dummy edges rec = -1).
# -----------------------------------------------------------------------------
def _bucket_edges(send, rec, n_pad, tile_n, tile_e):
    send = np.asarray(send, dtype=np.int64)
    rec = np.asarray(rec, dtype=np.int64)
    E = int(rec.shape[0])
    n_tiles = n_pad // tile_n

    order = np.argsort(rec, kind="stable")
    rec_s = rec[order]
    send_s = send[order]
    tile_of = rec_s // tile_n

    counts = np.bincount(tile_of, minlength=n_tiles).astype(np.int64)
    blocks = np.maximum(1, -(-counts // tile_e))            # >= 1 block / tile
    block_off = np.zeros(n_tiles, np.int64)
    block_off[1:] = np.cumsum(blocks)[:-1]
    total_blocks = int(blocks.sum())
    max_blocks = int(blocks.max())

    e_bucket = total_blocks * tile_e
    send_b = np.zeros(e_bucket, np.int32)
    rec_b = np.full(e_bucket, -1, np.int32)

    edge_start = np.zeros(n_tiles, np.int64)
    edge_start[1:] = np.cumsum(counts)[:-1]
    if E > 0:
        within = np.arange(E, dtype=np.int64) - np.repeat(edge_start, counts)
        dst = block_off[tile_of] * tile_e + within
        send_b[dst] = send_s
        rec_b[dst] = rec_s

    # clamped (node_tile, local_block) -> global block index, flattened 1-D
    k_idx = np.arange(max_blocks, dtype=np.int64)[None, :]
    tbl = block_off[:, None] + np.minimum(k_idx, blocks[:, None] - 1)

    return (send_b, rec_b,
            tbl.reshape(-1).astype(np.int32),
            blocks.astype(np.int32),
            total_blocks, max_blocks, n_tiles)


# -----------------------------------------------------------------------------
# Kernel
# -----------------------------------------------------------------------------
def egnn_kernel(tbl_ref, cnt_ref,                       # scalar-prefetch (SMEM)
                state_ref, dist_ref, rec_ref, x_ref,    # streamed inputs
                w1_ref, w1d_ref, b1_ref, w2_ref, b2_ref,
                w3_ref, b3_ref, w4_ref, b4_ref,
                out_ref, acc_ref):
    i = pl.program_id(0)                 # node tile (parallel)
    k = pl.program_id(1)                 # edge block within node tile (reduction)
    tile_n = acc_ref.shape[0]
    tile_e = state_ref.shape[0]

    @pl.when(k == 0)
    def _init():
        acc_ref[...] = jnp.zeros_like(acc_ref)

    # Skip clamped/duplicate blocks (node tiles with fewer edge blocks).
    @pl.when(k < cnt_ref[i])
    def _accumulate():
        # ---- message MLP: one K=2*H_pad bf16 matmul + f32 dist term ----------
        h = (jnp.dot(state_ref[...], w1_ref[...],
                     preferred_element_type=jnp.float32)
             + dist_ref[...] * w1d_ref[...]           # (tE,1)*(1,Hp) f32 VPU
             + b1_ref[...])
        h = _silu(h)
        msg = jnp.dot(h.astype(jnp.bfloat16), w2_ref[...],
                      preferred_element_type=jnp.float32) + b2_ref[...]
        msg = _silu(msg)                              # (tE, Hp) f32

        # ---- scatter-add into this node tile: on-the-fly local one-hot -------
        local = rec_ref[...] - i * tile_n             # (1, tE); dummies -> <0
        row = jax.lax.broadcasted_iota(jnp.int32, (tile_n, tile_e), 0)
        onehot = jnp.where(row == local, 1.0, 0.0).astype(jnp.bfloat16)
        acc_ref[...] += jnp.dot(onehot, msg.astype(jnp.bfloat16),
                                preferred_element_type=jnp.float32)

    # ---- finalize: update MLP on [x | aggr] for this node tile ---------------
    @pl.when(k == pl.num_programs(1) - 1)
    def _finalize():
        xa = jnp.concatenate(
            [x_ref[...], acc_ref[...].astype(jnp.bfloat16)], axis=-1)
        u = jnp.dot(xa, w3_ref[...],
                    preferred_element_type=jnp.float32) + b3_ref[...]
        u = _silu(u)
        out_ref[...] = (jnp.dot(u.astype(jnp.bfloat16), w4_ref[...],
                                preferred_element_type=jnp.float32)
                        + b4_ref[...]).astype(out_ref.dtype)


# -----------------------------------------------------------------------------
# Wrapper
# -----------------------------------------------------------------------------
def egnn_layer(x, pos, edge_index, params, *, tile_e=1024, tile_n=256):
    N, H = x.shape
    send = jnp.asarray(edge_index[0], jnp.int32)
    rec = jnp.asarray(edge_index[1], jnp.int32)
    E = int(send.shape[0])

    # lane-dense feature axis
    H_pad = _round_up(max(H, 128), 128)

    # tile sizing: tile_n multiple of 16 (bf16 sublane packing), tile_e of 128
    if N <= tile_n:
        tile_n = _round_up(N, 16)
    else:
        tile_n = _round_up(tile_n, 16)
    N_pad = _round_up(N, tile_n)
    tile_e = max(128, min(_round_up(tile_e, 128), _round_up(max(E, 1), 128)))

    # --- host-side bucketing (sorted by receiver, whole blocks per node tile) -
    (send_b, rec_b, blk_tbl, blk_cnt,
     total_blocks, max_blocks, n_tiles) = _bucket_edges(send, rec, N_pad,
                                                        tile_n, tile_e)
    E_bucket = total_blocks * tile_e

    send_b = jnp.asarray(send_b)
    rec_b = jnp.asarray(rec_b)
    blk_tbl = jnp.asarray(blk_tbl)          # (n_tiles * max_blocks,) int32
    blk_cnt = jnp.asarray(blk_cnt)          # (n_tiles,) int32

    bf = jnp.bfloat16
    # bf16 node features, lane-padded ONCE; gathers and the resident node tiles
    # both reuse this buffer (half the HBM bytes of the old f32 gather path).
    x_bf = jnp.pad(x, ((0, 0), (0, H_pad - H))).astype(bf)      # (N, H_pad)
    x_node = jnp.pad(x_bf, ((0, N_pad - N), (0, 0)))            # (N_pad, H_pad)

    rec_g = jnp.where(rec_b < 0, 0, rec_b)                      # clamp dummies
    state = jnp.concatenate([x_bf[send_b], x_bf[rec_g]], axis=1)  # (Eb, 2*Hp) bf16
    diff = pos[send_b] - pos[rec_g]
    dist = jnp.sqrt(jnp.sum(diff * diff, axis=1, keepdims=True))  # (Eb, 1) f32
    rec_row = rec_b.reshape(1, E_bucket)

    (w1s, w1r, w1d, b1, w2, b2, w3x, w3a, b3, w4, b4) = params

    def pad2(a, r, c):
        return jnp.pad(a, ((0, r - a.shape[0]), (0, c - a.shape[1])))

    # stacked weights -> single K = 2*H_pad matmuls (fills 256-deep MXU)
    w1_p = jnp.concatenate([pad2(w1s, H_pad, H_pad),
                            pad2(w1r, H_pad, H_pad)], axis=0).astype(bf)
    w1d_p = pad2(w1d, 1, H_pad)                                  # f32 (dist term)
    b1_p = pad2(b1, 1, H_pad)
    w2_p = pad2(w2, H_pad, H_pad).astype(bf)
    b2_p = pad2(b2, 1, H_pad)
    w3_p = jnp.concatenate([pad2(w3x, H_pad, H_pad),
                            pad2(w3a, H_pad, H_pad)], axis=0).astype(bf)
    b3_p = pad2(b3, 1, H_pad)
    w4_p = pad2(w4, H_pad, H_pad).astype(bf)
    b4_p = pad2(b4, 1, H_pad)

    grid = (n_tiles, max_blocks)
    mb = max_blocks

    edge_blk = lambda i, k, tbl, cnt: (tbl[i * mb + k], 0)
    rec_blk = lambda i, k, tbl, cnt: (0, tbl[i * mb + k])
    node_blk = lambda i, k, tbl, cnt: (i, 0)
    const = lambda i, k, tbl, cnt: (0, 0)

    in_specs = [
        pl.BlockSpec((tile_e, 2 * H_pad), edge_blk),     # state  (bf16)
        pl.BlockSpec((tile_e, 1), edge_blk),             # dist   (f32)
        pl.BlockSpec((1, tile_e), rec_blk),              # rec    (int32)
        pl.BlockSpec((tile_n, H_pad), node_blk),         # x tile (bf16)
        pl.BlockSpec((2 * H_pad, H_pad), const),         # w1 (stacked)
        pl.BlockSpec((1, H_pad), const),                 # w1d
        pl.BlockSpec((1, H_pad), const),                 # b1
        pl.BlockSpec((H_pad, H_pad), const),             # w2
        pl.BlockSpec((1, H_pad), const),                 # b2
        pl.BlockSpec((2 * H_pad, H_pad), const),         # w3 (stacked)
        pl.BlockSpec((1, H_pad), const),                 # b3
        pl.BlockSpec((H_pad, H_pad), const),             # w4
        pl.BlockSpec((1, H_pad), const),                 # b4
    ]

    out = pl.pallas_call(
        egnn_kernel,
        out_shape=jax.ShapeDtypeStruct((N_pad, H_pad), jnp.float32),
        grid_spec=pltpu.PrefetchScalarGridSpec(
            num_scalar_prefetch=2,
            grid=grid,
            in_specs=in_specs,
            out_specs=pl.BlockSpec((tile_n, H_pad), node_blk),
            scratch_shapes=[pltpu.VMEM((tile_n, H_pad), jnp.float32)],
        ),
        compiler_params=pltpu.CompilerParams(
            dimension_semantics=("parallel", "arbitrary"),
            vmem_limit_bytes=_pick_vmem_limit(),
        ),
    )(blk_tbl, blk_cnt, state, dist, rec_row, x_node,
      w1_p, w1d_p, b1_p, w2_p, b2_p, w3_p, b3_p, w4_p, b4_p)

    return out[:N, :H]


# -----------------------------------------------------------------------------
# Params / reference / tests
# -----------------------------------------------------------------------------
def make_params(key, H):
    """Synthetic params matching the PyTorch module's shapes.

    message_mlp: Linear(2H+1, H) -> SiLU -> Linear(H, H) -> SiLU
    update_mlp : Linear(2H, H)   -> SiLU -> Linear(H, H)
    Weights stored (in, out) so y = x @ W + b; first Linear of each MLP is
    split along its input axis (send / rec / dist, and x / aggr).
    """
    ks = jax.random.split(key, 8)

    def unif(k, shape, fan_in):
        bound = 1.0 / np.sqrt(fan_in)
        return jax.random.uniform(k, shape, jnp.float32, -bound, bound)

    w1 = unif(ks[0], (2 * H + 1, H), 2 * H + 1)
    b1 = unif(ks[1], (1, H), 2 * H + 1)
    w1s, w1r, w1d = w1[:H], w1[H:2 * H], w1[2 * H:2 * H + 1]
    w2 = unif(ks[2], (H, H), H)
    b2 = unif(ks[3], (1, H), H)
    w3 = unif(ks[4], (2 * H, H), 2 * H)
    b3 = unif(ks[5], (1, H), 2 * H)
    w3x, w3a = w3[:H], w3[H:]
    w4 = unif(ks[6], (H, H), H)
    b4 = unif(ks[7], (1, H), H)
    return (w1s, w1r, w1d, b1, w2, b2, w3x, w3a, b3, w4, b4)


def egnn_reference(x, pos, edge_index, params):
    """Pure-JAX f32 reference mirroring the PyTorch forward."""
    (w1s, w1r, w1d, b1, w2, b2, w3x, w3a, b3, w4, b4) = params
    send, rec = edge_index[0], edge_index[1]
    dist = jnp.linalg.norm(pos[send] - pos[rec], axis=1)
    h = jax.nn.silu(x[send] @ w1s + x[rec] @ w1r + dist[:, None] * w1d + b1)
    msg = jax.nn.silu(h @ w2 + b2)
    aggr = jnp.zeros_like(x).at[rec].add(msg)
    u = jax.nn.silu(x @ w3x + aggr @ w3a + b3)
    return u @ w4 + b4


def _run_case(key, N, E, H, P, rec_max=None, **tiles):
    kx, kp, ks, kr, kw = jax.random.split(key, 5)
    x = jax.random.normal(kx, (N, H), jnp.float32)
    pos = jax.random.normal(kp, (N, P), jnp.float32)
    send = jax.random.randint(ks, (E,), 0, N, jnp.int32)
    rec = jax.random.randint(kr, (E,), 0, rec_max or N, jnp.int32)
    edge_index = jnp.stack([send, rec], axis=0)
    params = make_params(kw, H)

    out = egnn_layer(x, pos, edge_index, params, **tiles)
    out = jax.block_until_ready(out)
    ref = egnn_reference(x, pos, edge_index, params)
    # bf16 matmul operands with f32 accumulation -> loose-ish tolerance
    np.testing.assert_allclose(np.asarray(out), np.asarray(ref),
                               rtol=3e-2, atol=3e-2)


if __name__ == "__main__":
    key = jax.random.PRNGKey(0)
    k1, k2, k3 = jax.random.split(key, 3)

    # multi node tiles x multiple edge blocks per tile (exercises bucketing)
    _run_case(k1, N=64, E=700, H=32, P=3, tile_e=128, tile_n=32)
    # skewed receivers: some node tiles have ZERO edges (dummy block + clamp path)
    _run_case(k2, N=64, E=300, H=32, P=3, rec_max=24, tile_e=128, tile_n=16)
    # tiny single-tile path with default tiles
    _run_case(k3, N=8, E=16, H=32, P=3)

    print("KERNEL_OK")
</pallas_src>

<mosaic_0001>
module attributes {stable_mosaic.version = 11 : i64} {
  func.func @egnn_kernel(%arg0: i32, %arg1: i32, %arg2: memref<6xi32, #tpu.memory_space<smem>>, %arg3: memref<2xi32, #tpu.memory_space<smem>>, %arg4: memref<128x256xbf16, #tpu.memory_space<vmem>>, %arg5: memref<128x1xf32, #tpu.memory_space<vmem>>, %arg6: memref<1x128xi32, #tpu.memory_space<vmem>>, %arg7: memref<32x128xbf16, #tpu.memory_space<vmem>>, %arg8: memref<256x128xbf16, #tpu.memory_space<vmem>>, %arg9: memref<1x128xf32, #tpu.memory_space<vmem>>, %arg10: memref<1x128xf32, #tpu.memory_space<vmem>>, %arg11: memref<128x128xbf16, #tpu.memory_space<vmem>>, %arg12: memref<1x128xf32, #tpu.memory_space<vmem>>, %arg13: memref<256x128xbf16, #tpu.memory_space<vmem>>, %arg14: memref<1x128xf32, #tpu.memory_space<vmem>>, %arg15: memref<128x128xbf16, #tpu.memory_space<vmem>>, %arg16: memref<1x128xf32, #tpu.memory_space<vmem>>, %arg17: memref<32x128xf32, #tpu.memory_space<vmem>>, %arg18: memref<32x128xf32, #tpu.memory_space<vmem>>) attributes {dimension_semantics = [#tpu.dimension_semantics<parallel>, #tpu.dimension_semantics<arbitrary>], iteration_bounds = array<i64: 2, 3>, scalar_prefetch = 2 : i64, scratch_operands = 1 : i64, tpu.core_type = #tpu.core_type<tc>, window_params = [{transform_indices = @transform_0, window_bounds = array<i64: 128, 256>}, {transform_indices = @transform_1, window_bounds = array<i64: 128, 1>}, {transform_indices = @transform_2, window_bounds = array<i64: 1, 128>}, {transform_indices = @transform_3, window_bounds = array<i64: 32, 128>}, {pipeline_mode = #tpu.pipeline_mode<synchronous>, transform_indices = @transform_4, window_bounds = array<i64: 256, 128>}, {pipeline_mode = #tpu.pipeline_mode<synchronous>, transform_indices = @transform_5, window_bounds = array<i64: 1, 128>}, {pipeline_mode = #tpu.pipeline_mode<synchronous>, transform_indices = @transform_6, window_bounds = array<i64: 1, 128>}, {pipeline_mode = #tpu.pipeline_mode<synchronous>, transform_indices = @transform_7, window_bounds = array<i64: 128, 128>}, {pipeline_mode = #tpu.pipeline_mode<synchronous>, transform_indices = @transform_8, window_bounds = array<i64: 1, 128>}, {pipeline_mode = #tpu.pipeline_mode<synchronous>, transform_indices = @transform_9, window_bounds = array<i64: 256, 128>}, {pipeline_mode = #tpu.pipeline_mode<synchronous>, transform_indices = @transform_10, window_bounds = array<i64: 1, 128>}, {pipeline_mode = #tpu.pipeline_mode<synchronous>, transform_indices = @transform_11, window_bounds = array<i64: 128, 128>}, {pipeline_mode = #tpu.pipeline_mode<synchronous>, transform_indices = @transform_12, window_bounds = array<i64: 1, 128>}, {transform_indices = @transform_13, window_bounds = array<i64: 32, 128>}]} {
    %c0_i32 = arith.constant 0 : i32
    %0 = arith.cmpi eq, %arg1, %c0_i32 : i32
    %1 = arith.extui %0 : i1 to i32
    %c0_i32_0 = arith.constant 0 : i32
    %2 = arith.cmpi ne, %1, %c0_i32_0 : i32
    scf.if %2 {
      %cst = arith.constant 0.000000e+00 : f32
      %11 = vector.broadcast %cst : f32 to vector<32x128xf32>
      %c0 = arith.constant 0 : index
      %c0_3 = arith.constant 0 : index
      %12 = vector.load %arg18[%c0, %c0_3] : memref<32x128xf32, #tpu.memory_space<vmem>>, vector<32x128xf32>
      tpu.vector_store %arg18[%c0, %c0_3], %11 {strides = array<i32>} : memref<32x128xf32, #tpu.memory_space<vmem>>, vector<32x128xf32>,
    } else {
    }
    %3 = arith.index_cast %arg0 : i32 to index
    %4 = memref.load %arg3[%3] : memref<2xi32, #tpu.memory_space<smem>>
    %5 = arith.cmpi slt, %arg1, %4 : i32
    %6 = arith.extui %5 : i1 to i32
    %c0_i32_1 = arith.constant 0 : i32
    %7 = arith.cmpi ne, %6, %c0_i32_1 : i32
    scf.if %7 {
      %c0 = arith.constant 0 : index
      %c0_3 = arith.constant 0 : index
      %11 = vector.load %arg4[%c0, %c0_3] : memref<128x256xbf16, #tpu.memory_space<vmem>>, vector<128x256xbf16>
      %c0_4 = arith.constant 0 : index
      %c0_5 = arith.constant 0 : index
      %12 = vector.load %arg8[%c0_4, %c0_5] : memref<256x128xbf16, #tpu.memory_space<vmem>>, vector<256x128xbf16>
      %cst = arith.constant dense<0.000000e+00> : vector<128x128xf32>
      %13 = tpu.matmul %11, %12, %cst {dimension_numbers = #tpu.dot_dimension_numbers<[1], [0], [0], [1], [0, 0, 1, 1], [], []>} : vector<128x256xbf16>, vector<256x128xbf16>, vector<128x128xf32> -> vector<128x128xf32>
      %c0_6 = arith.constant 0 : index
      %c0_7 = arith.constant 0 : index
      %14 = vector.load %arg5[%c0_6, %c0_7] : memref<128x1xf32, #tpu.memory_space<vmem>>, vector<128x1xf32>
      %c0_8 = arith.constant 0 : index
      %c0_9 = arith.constant 0 : index
      %15 = vector.load %arg9[%c0_8, %c0_9] : memref<1x128xf32, #tpu.memory_space<vmem>>, vector<1x128xf32>
      %16 = vector.broadcast %14 : vector<128x1xf32> to vector<128x128xf32>
      %17 = vector.broadcast %15 : vector<1x128xf32> to vector<128x128xf32>
      %18 = arith.mulf %16, %17 : vector<128x128xf32>
      %19 = arith.addf %13, %18 : vector<128x128xf32>
      %c0_10 = arith.constant 0 : index
      %c0_11 = arith.constant 0 : index
      %20 = vector.load %arg10[%c0_10, %c0_11] : memref<1x128xf32, #tpu.memory_space<vmem>>, vector<1x128xf32>
      %21 = vector.broadcast %20 : vector<1x128xf32> to vector<128x128xf32>
      %22 = arith.addf %19, %21 : vector<128x128xf32>
      %23 = arith.negf %22 : vector<128x128xf32>
      %24 = math.exp %23 : vector<128x128xf32>
      %cst_12 = arith.constant 1.000000e+00 : f32
      %25 = vector.broadcast %cst_12 : f32 to vector<128x128xf32>
      %26 = arith.addf %25, %24 : vector<128x128xf32>
      %27 = arith.divf %25, %26 : vector<128x128xf32>
      %28 = arith.mulf %22, %27 : vector<128x128xf32>
      %29 = arith.truncf %28 : vector<128x128xf32> to vector<128x128xbf16>
      %c0_13 = arith.constant 0 : index
      %c0_14 = arith.constant 0 : index
      %30 = vector.load %arg11[%c0_13, %c0_14] : memref<128x128xbf16, #tpu.memory_space<vmem>>, vector<128x128xbf16>
      %cst_15 = arith.constant dense<0.000000e+00> : vector<128x128xf32>
      %31 = tpu.matmul %29, %30, %cst_15 {dimension_numbers = #tpu.dot_dimension_numbers<[1], [0], [0], [1], [0, 0, 1, 1], [], []>} : vector<128x128xbf16>, vector<128x128xbf16>, vector<128x128xf32> -> vector<128x128xf32>
      %c0_16 = arith.constant 0 : index
      %c0_17 = arith.constant 0 : index
      %32 = vector.load %arg12[%c0_16, %c0_17] : memref<1x128xf32, #tpu.memory_space<vmem>>, vector<1x128xf32>
      %33 = vector.broadcast %32 : vector<1x128xf32> to vector<128x128xf32>
      %34 = arith.addf %31, %33 : vector<128x128xf32>
      %35 = arith.negf %34 : vector<128x128xf32>
      %36 = math.exp %35 : vector<128x128xf32>
      %cst_18 = arith.constant 1.000000e+00 : f32
      %37 = vector.broadcast %cst_18 : f32 to vector<128x128xf32>
      %38 = arith.addf %37, %36 : vector<128x128xf32>
      %39 = arith.divf %37, %38 : vector<128x128xf32>
      %40 = arith.mulf %34, %39 : vector<128x128xf32>
      %c0_19 = arith.constant 0 : index
      %c0_20 = arith.constant 0 : index
      %41 = vector.load %arg6[%c0_19, %c0_20] : memref<1x128xi32, #tpu.memory_space<vmem>>, vector<1x128xi32>
      %c32_i32 = arith.constant 32 : i32
      %42 = arith.muli %arg0, %c32_i32 : i32
      %43 = vector.broadcast %42 : i32 to vector<1x128xi32>
      %44 = arith.subi %41, %43 : vector<1x128xi32>
      %45 = tpu.iota {dimensions = array<i32: 0>} : vector<32x128xi32>
      %46 = vector.broadcast %44 : vector<1x128xi32> to vector<32x128xi32>
      %47 = arith.cmpi eq, %45, %46 : vector<32x128xi32>
      %cst_21 = arith.constant 1.000000e+00 : f32
      %cst_22 = arith.constant 0.000000e+00 : f32
      %48 = vector.broadcast %cst_21 : f32 to vector<32x128xf32>
      %49 = vector.broadcast %cst_22 : f32 to vector<32x128xf32>
      %50 = arith.select %47, %48, %49 : vector<32x128xi1>, vector<32x128xf32>
      %51 = arith.truncf %50 : vector<32x128xf32> to vector<32x128xbf16>
      %c0_23 = arith.constant 0 : index
      %c0_24 = arith.constant 0 : index
      %52 = vector.load %arg18[%c0_23, %c0_24] : memref<32x128xf32, #tpu.memory_space<vmem>>, vector<32x128xf32>
      %53 = arith.truncf %40 : vector<128x128xf32> to vector<128x128xbf16>
      %cst_25 = arith.constant dense<0.000000e+00> : vector<32x128xf32>
      %54 = tpu.matmul %51, %53, %cst_25 {dimension_numbers = #tpu.dot_dimension_numbers<[1], [0], [0], [1], [0, 0, 1, 1], [], []>} : vector<32x128xbf16>, vector<128x128xbf16>, vector<32x128xf32> -> vector<32x128xf32>
      %55 = arith.addf %52, %54 : vector<32x128xf32>
      %c0_26 = arith.constant 0 : index
      %c0_27 = arith.constant 0 : index
      %56 = vector.load %arg18[%c0_26, %c0_27] : memref<32x128xf32, #tpu.memory_space<vmem>>, vector<32x128xf32>
      tpu.vector_store %arg18[%c0_26, %c0_27], %55 {strides = array<i32>} : memref<32x128xf32, #tpu.memory_space<vmem>>, vector<32x128xf32>,
    } else {
    }
    %c2_i32 = arith.constant 2 : i32
    %8 = arith.cmpi eq, %arg1, %c2_i32 : i32
    %9 = arith.extui %8 : i1 to i32
    %c0_i32_2 = arith.constant 0 : i32
    %10 = arith.cmpi ne, %9, %c0_i32_2 : i32
    scf.if %10 {
      %c0 = arith.constant 0 : index
      %c0_3 = arith.constant 0 : index
      %11 = vector.load %arg7[%c0, %c0_3] : memref<32x128xbf16, #tpu.memory_space<vmem>>, vector<32x128xbf16>
      %c0_4 = arith.constant 0 : index
      %c0_5 = arith.constant 0 : index
      %12 = vector.load %arg18[%c0_4, %c0_5] : memref<32x128xf32, #tpu.memory_space<vmem>>, vector<32x128xf32>
      %13 = arith.truncf %12 : vector<32x128xf32> to vector<32x128xbf16>
      %14 = tpu.concatenate %11, %13 in 1 : vector<32x128xbf16>, vector<32x128xbf16> -> vector<32x256xbf16>
      %c0_6 = arith.constant 0 : index
      %c0_7 = arith.constant 0 : index
      %15 = vector.load %arg13[%c0_6, %c0_7] : memref<256x128xbf16, #tpu.memory_space<vmem>>, vector<256x128xbf16>
      %cst = arith.constant dense<0.000000e+00> : vector<32x128xf32>
      %16 = tpu.matmul %14, %15, %cst {dimension_numbers = #tpu.dot_dimension_numbers<[1], [0], [0], [1], [0, 0, 1, 1], [], []>} : vector<32x256xbf16>, vector<256x128xbf16>, vector<32x128xf32> -> vector<32x128xf32>
      %c0_8 = arith.constant 0 : index
      %c0_9 = arith.constant 0 : index
      %17 = vector.load %arg14[%c0_8, %c0_9] : memref<1x128xf32, #tpu.memory_space<vmem>>, vector<1x128xf32>
      %18 = vector.broadcast %17 : vector<1x128xf32> to vector<32x128xf32>
      %19 = arith.addf %16, %18 : vector<32x128xf32>
      %20 = arith.negf %19 : vector<32x128xf32>
      %21 = math.exp %20 : vector<32x128xf32>
      %cst_10 = arith.constant 1.000000e+00 : f32
      %22 = vector.broadcast %cst_10 : f32 to vector<32x128xf32>
      %23 = arith.addf %22, %21 : vector<32x128xf32>
      %24 = arith.divf %22, %23 : vector<32x128xf32>
      %25 = arith.mulf %19, %24 : vector<32x128xf32>
      %26 = arith.truncf %25 : vector<32x128xf32> to vector<32x128xbf16>
      %c0_11 = arith.constant 0 : index
      %c0_12 = arith.constant 0 : index
      %27 = vector.load %arg15[%c0_11, %c0_12] : memref<128x128xbf16, #tpu.memory_space<vmem>>, vector<128x128xbf16>
      %cst_13 = arith.constant dense<0.000000e+00> : vector<32x128xf32>
      %28 = tpu.matmul %26, %27, %cst_13 {dimension_numbers = #tpu.dot_dimension_numbers<[1], [0], [0], [1], [0, 0, 1, 1], [], []>} : vector<32x128xbf16>, vector<128x128xbf16>, vector<32x128xf32> -> vector<32x128xf32>
      %c0_14 = arith.constant 0 : index
      %c0_15 = arith.constant 0 : index
      %29 = vector.load %arg16[%c0_14, %c0_15] : memref<1x128xf32, #tpu.memory_space<vmem>>, vector<1x128xf32>
      %30 = vector.broadcast %29 : vector<1x128xf32> to vector<32x128xf32>
      %31 = arith.addf %28, %30 : vector<32x128xf32>
      %c0_16 = arith.constant 0 : index
      %c0_17 = arith.constant 0 : index
      %32 = vector.load %arg17[%c0_16, %c0_17] : memref<32x128xf32, #tpu.memory_space<vmem>>, vector<32x128xf32>
      tpu.vector_store %arg17[%c0_16, %c0_17], %31 {strides = array<i32>} : memref<32x128xf32, #tpu.memory_space<vmem>>, vector<32x128xf32>,
    } else {
    }
    return
  }
  func.func @transform_0(%arg0: i32, %arg1: i32, %arg2: memref<6xi32, #tpu.memory_space<smem>>, %arg3: memref<2xi32, #tpu.memory_space<smem>>) -> (i32, i32) {
    %c3_i32 = arith.constant 3 : i32
    %0 = arith.muli %arg0, %c3_i32 : i32
    %1 = arith.addi %0, %arg1 : i32
    %2 = arith.index_cast %1 : i32 to index
    %3 = memref.load %arg2[%2] : memref<6xi32, #tpu.memory_space<smem>>
    %c0_i32 = arith.constant 0 : i32
    %c0_i32_0 = arith.constant 0 : i32
    return %3, %c0_i32 : i32, i32
  }
  func.func @transform_1(%arg0: i32, %arg1: i32, %arg2: memref<6xi32, #tpu.memory_space<smem>>, %arg3: memref<2xi32, #tpu.memory_space<smem>>) -> (i32, i32) {
    %c3_i32 = arith.constant 3 : i32
    %0 = arith.muli %arg0, %c3_i32 : i32
    %1 = arith.addi %0, %arg1 : i32
    %2 = arith.index_cast %1 : i32 to index
    %3 = memref.load %arg2[%2] : memref<6xi32, #tpu.memory_space<smem>>
    %c0_i32 = arith.constant 0 : i32
    %c0_i32_0 = arith.constant 0 : i32
    return %3, %c0_i32 : i32, i32
  }
  func.func @transform_2(%arg0: i32, %arg1: i32, %arg2: memref<6xi32, #tpu.memory_space<smem>>, %arg3: memref<2xi32, #tpu.memory_space<smem>>) -> (i32, i32) {
    %c3_i32 = arith.constant 3 : i32
    %0 = arith.muli %arg0, %c3_i32 : i32
    %1 = arith.addi %0, %arg1 : i32
    %2 = arith.index_cast %1 : i32 to index
    %3 = memref.load %arg2[%2] : memref<6xi32, #tpu.memory_space<smem>>
    %c0_i32 = arith.constant 0 : i32
    %c0_i32_0 = arith.constant 0 : i32
    return %c0_i32, %3 : i32, i32
  }
  func.func @transform_3(%arg0: i32, %arg1: i32, %arg2: memref<6xi32, #tpu.memory_space<smem>>, %arg3: memref<2xi32, #tpu.memory_space<smem>>) -> (i32, i32) {
    %c0_i32 = arith.constant 0 : i32
    %c0_i32_0 = arith.constant 0 : i32
    return %arg0, %c0_i32 : i32, i32
  }
  func.func @transform_4(%arg0: i32, %arg1: i32, %arg2: memref<6xi32, #tpu.memory_space<smem>>, %arg3: memref<2xi32, #tpu.memory_space<smem>>) -> (i32, i32) {
    %c0_i32 = arith.constant 0 : i32
    %c0_i32_0 = arith.constant 0 : i32
    %c0_i32_1 = arith.constant 0 : i32
    return %c0_i32, %c0_i32_0 : i32, i32
  }
  func.func @transform_5(%arg0: i32, %arg1: i32, %arg2: memref<6xi32, #tpu.memory_space<smem>>, %arg3: memref<2xi32, #tpu.memory_space<smem>>) -> (i32, i32) {
    %c0_i32 = arith.constant 0 : i32
    %c0_i32_0 = arith.constant 0 : i32
    %c0_i32_1 = arith.constant 0 : i32
    return %c0_i32, %c0_i32_0 : i32, i32
  }
  func.func @transform_6(%arg0: i32, %arg1: i32, %arg2: memref<6xi32, #tpu.memory_space<smem>>, %arg3: memref<2xi32, #tpu.memory_space<smem>>) -> (i32, i32) {
    %c0_i32 = arith.constant 0 : i32
    %c0_i32_0 = arith.constant 0 : i32
    %c0_i32_1 = arith.constant 0 : i32
    return %c0_i32, %c0_i32_0 : i32, i32
  }
  func.func @transform_7(%arg0: i32, %arg1: i32, %arg2: memref<6xi32, #tpu.memory_space<smem>>, %arg3: memref<2xi32, #tpu.memory_space<smem>>) -> (i32, i32) {
    %c0_i32 = arith.constant 0 : i32
    %c0_i32_0 = arith.constant 0 : i32
    %c0_i32_1 = arith.constant 0 : i32
    return %c0_i32, %c0_i32_0 : i32, i32
  }
  func.func @transform_8(%arg0: i32, %arg1: i32, %arg2: memref<6xi32, #tpu.memory_space<smem>>, %arg3: memref<2xi32, #tpu.memory_space<smem>>) -> (i32, i32) {
    %c0_i32 = arith.constant 0 : i32
    %c0_i32_0 = arith.constant 0 : i32
    %c0_i32_1 = arith.constant 0 : i32
    return %c0_i32, %c0_i32_0 : i32, i32
  }
  func.func @transform_9(%arg0: i32, %arg1: i32, %arg2: memref<6xi32, #tpu.memory_space<smem>>, %arg3: memref<2xi32, #tpu.memory_space<smem>>) -> (i32, i32) {
    %c0_i32 = arith.constant 0 : i32
    %c0_i32_0 = arith.constant 0 : i32
    %c0_i32_1 = arith.constant 0 : i32
    return %c0_i32, %c0_i32_0 : i32, i32
  }
  func.func @transform_10(%arg0: i32, %arg1: i32, %arg2: memref<6xi32, #tpu.memory_space<smem>>, %arg3: memref<2xi32, #tpu.memory_space<smem>>) -> (i32, i32) {
    %c0_i32 = arith.constant 0 : i32
    %c0_i32_0 = arith.constant 0 : i32
    %c0_i32_1 = arith.constant 0 : i32
    return %c0_i32, %c0_i32_0 : i32, i32
  }
  func.func @transform_11(%arg0: i32, %arg1: i32, %arg2: memref<6xi32, #tpu.memory_space<smem>>, %arg3: memref<2xi32, #tpu.memory_space<smem>>) -> (i32, i32) {
    %c0_i32 = arith.constant 0 : i32
    %c0_i32_0 = arith.constant 0 : i32
    %c0_i32_1 = arith.constant 0 : i32
    return %c0_i32, %c0_i32_0 : i32, i32
  }
  func.func @transform_12(%arg0: i32, %arg1: i32, %arg2: memref<6xi32, #tpu.memory_space<smem>>, %arg3: memref<2xi32, #tpu.memory_space<smem>>) -> (i32, i32) {
    %c0_i32 = arith.constant 0 : i32
    %c0_i32_0 = arith.constant 0 : i32
    %c0_i32_1 = arith.constant 0 : i32
    return %c0_i32, %c0_i32_0 : i32, i32
  }
  func.func @transform_13(%arg0: i32, %arg1: i32, %arg2: memref<6xi32, #tpu.memory_space<smem>>, %arg3: memref<2xi32, #tpu.memory_space<smem>>) -> (i32, i32) {
    %c0_i32 = arith.constant 0 : i32
    %c0_i32_0 = arith.constant 0 : i32
    return %arg0, %c0_i32 : i32, i32
  }
}

</mosaic_0001>

<llo_original>
// kernel: tpu_custom_call.1
$region0: #{tpu_custom_call.1}
  #allocation0 [shape = 'u32[]', space=smem, size = 0x4, offset = 0x4, fixed_abs, tag = 'smem constant byte address 0x4 - core index']
  #allocation1 [shape = 'u32[144,128]{1,0:T(1,128)}', space=vmem, size = 0x12000, scoped, tag = 'internal scratch']
  #allocation2 [shape = 'f32[32,128]{1,0:T(8,128)}', space=vmem, size = 0x4000, scoped, tag = 'scratch operand']
  #allocation3 [shape = 's32[1]{0}', space=sflag, size = 0x4, scoped, tag = 'scoped memory for tpu_custom_call.1']
  #allocation4 [shape = 'u8[512]{0}', space=smem, size = 0x200, scoped, tag = 'prefetched SMEM operand 0']
  #allocation5 [shape = 'u8[512]{0}', space=smem, size = 0x200, scoped, tag = 'prefetched SMEM operand 1']
  %s0 = inlined_call_operand.vmem [shape: s32[6], index: 0, kind: input, shape index: {}]
  %s1 = inlined_call_operand.vmem [shape: s32[2], index: 1, kind: input, shape index: {}]
  %s2 = inlined_call_operand.vmem [shape: bf16[768,256], index: 2, kind: input, shape index: {}]
  %s3 = inlined_call_operand.vmem [shape: f32[768,1], index: 3, kind: input, shape index: {}]
  %s4 = inlined_call_operand.vmem [shape: s32[1,768], index: 4, kind: input, shape index: {}]
  %s5 = inlined_call_operand.hbm [shape: bf16[64,128], index: 5, kind: input, shape index: {}]
  %s6 = inlined_call_operand.hbm [shape: bf16[256,128], index: 6, kind: input, shape index: {}]
  %s7 = inlined_call_operand.vmem [shape: f32[1,128], index: 7, kind: input, shape index: {}]
  %s8 = inlined_call_operand.vmem [shape: f32[1,128], index: 8, kind: input, shape index: {}]
  %s9 = inlined_call_operand.hbm [shape: bf16[128,128], index: 9, kind: input, shape index: {}]
  %s10 = inlined_call_operand.vmem [shape: f32[1,128], index: 10, kind: input, shape index: {}]
  %s11 = inlined_call_operand.hbm [shape: bf16[256,128], index: 11, kind: input, shape index: {}]
  %s12 = inlined_call_operand.vmem [shape: f32[1,128], index: 12, kind: input, shape index: {}]
  %s13 = inlined_call_operand.hbm [shape: bf16[128,128], index: 13, kind: input, shape index: {}]
  %s14 = inlined_call_operand.vmem [shape: f32[1,128], index: 14, kind: input, shape index: {}]
  %s15 = inlined_call_operand.hbm [shape: f32[64,128], index: 15, kind: output, shape index: {}]
  %s16 = sld [smem:[#allocation0]]
  $region117: #{tpu_custom_call.1} parent=0
    _
  %s18 = ssub.s32 1, %s16
  %s19 = scalar_select 0, %s18, %s16
  %s20 = sshll.u32 %s0, 4
  %s21 = int_to_ptr.vmem [resolvable:$true] %s20
  %23 = dma.vmem_to_smem %s21, 16, [#allocation4], [#allocation3]
  %s24 = sshll.u32 %s1, 4
  %s25 = int_to_ptr.vmem [resolvable:$true] %s24
  %27 = dma.vmem_to_smem %s25, 16, [#allocation5], [#allocation3]
  %28 = dma.done [#allocation3], 32
  %29 = sfence
  $region1: #{tpu_custom_call.1} parent=0
    #allocation6 [shape = 'u8[16384]{0}', space=vmem, size = 0x4000, scoped, tag = 'input window, operand 5']
    #allocation7 [shape = 's32[2]{0}', space=sflag, size = 0x8, scoped, tag = 'scoped memory for tpu_custom_call.1']
    #allocation8 [shape = 's32[2]{0}', space=sflag, size = 0x8, scoped, tag = 'scoped memory for tpu_custom_call.1']
    #allocation9 [shape = 'u8[65536]{0}', space=vmem, size = 0x10000, scoped, tag = 'input window, operand 6, single buffered']
    #allocation10 [shape = 's32[1]{0}', space=sflag, size = 0x4, scoped, tag = 'scoped memory for tpu_custom_call.1']
    #allocation11 [shape = 'u8[32768]{0}', space=vmem, size = 0x8000, scoped, tag = 'input window, operand 9, single buffered']
    #allocation12 [shape = 'u8[65536]{0}', space=vmem, size = 0x10000, scoped, tag = 'input window, operand 11, single buffered']
    #allocation13 [shape = 's32[1]{0}', space=sflag, size = 0x4, scoped, tag = 'scoped memory for tpu_custom_call.1']
    #allocation14 [shape = 'u8[32768]{0}', space=vmem, size = 0x8000, scoped, tag = 'input window, operand 13, single buffered']
    #allocation15 [shape = 'u8[32768]{0}', space=vmem, size = 0x8000, scoped, tag = 'output window, operand 0']
    %30 = vsyncpa [#allocation7], 0
    %s31 = scalar_lea.sflag [#allocation7], 1
    %32 = vsyncpa %s31, 0
    %33 = vsyncpa [#allocation10], 0
    %34 = vsyncpa [#allocation13], 0
    %35 = vsyncpa [#allocation8], 0
    %s36 = scalar_lea.sflag [#allocation8], 1
    %37 = vsyncpa %s36, 0
    loop: start=0, step=1, limit=8
    $region2: #{tpu_custom_call.1} parent=1 // loop_pre_header
      _
    $region3: #{tpu_custom_call.1} parent=1 // loop_header
      %s39 = sphi 0, %s43
      %p40 = scmp.ge.s32.totalorder %s39, 8
      %s46 = sphi 0, %s58
      %s47 = sphi 0, %s54
      %s48 = sphi 0, %s46
      %s49 = sphi 0, %s47
      %s50 = sphi 0, %s48
      %s51 = sphi 0, %s49
      %s67 = sphi 0, %s69
      %s70 = sphi 0, %s67
      %s71 = sphi 0, %s70
      %s87 = sphi 0, %s71
      %s99 = sphi 0, %s101
      %s102 = sphi 0, %s99
      %s103 = sphi 0, %s102
      %s119 = sphi 0, %s103
      %s131 = sphi 0, %s133
      %s134 = sphi 0, %s131
      %s135 = sphi 0, %s134
      %s151 = sphi 0, %s135
      %s157 = sphi 0, %s159
      %s160 = sphi 0, %s157
      %s161 = sphi 0, %s160
      %s177 = sphi 0, %s161
      %s181 = sphi 0, %s181
      %s183 = sphi 0, %s181
      %s184 = sphi 0, %s183
      %s198 = sphi 0, %s184
      %s202 = sphi 0, %s202
      %s204 = sphi 0, %s202
      %s205 = sphi 0, %s204
      %s219 = sphi 0, %s205
      %s223 = sphi 0, %s223
      %s225 = sphi 0, %s223
      %s226 = sphi 0, %s225
      %s240 = sphi 0, %s226
      %s244 = sphi 0, %s244
      %s246 = sphi 0, %s244
      %s247 = sphi 0, %s246
      %s261 = sphi 0, %s247
      %s265 = sphi 0, %s265
      %s267 = sphi 0, %s265
      %s268 = sphi 0, %s267
      %s282 = sphi 0, %s268
      %s286 = sphi 0, %s286
      %s288 = sphi 0, %s286
      %s289 = sphi 0, %s288
      %s303 = sphi 0, %s289
      %s307 = sphi 0, %s307
      %s309 = sphi 0, %s307
      %s310 = sphi 0, %s309
      %s324 = sphi 0, %s310
      %s328 = sphi 0, %s328
      %s330 = sphi 0, %s328
      %s331 = sphi 0, %s330
      %s345 = sphi 0, %s331
      %s349 = sphi 0, %s349
      %s351 = sphi 0, %s349
      %s352 = sphi 0, %s351
      %s366 = sphi 0, %s352
      %s372 = sphi 0, %s374
      %s375 = sphi 0, %s372
      %s376 = sphi 0, %s375
      %s392 = sphi 0, %s376
    $region4: #{tpu_custom_call.1} parent=1 // loop_header_branch
      %42 = sbr.rel (%p40) target = $region8
    $region5: #{tpu_custom_call.1} parent=1 // loop_body
      %s44 = ssub.s32 %s39, 1
      %s45 = ssub.s32 %s39, 2
      %s52 = sadd.s32 1, %s47
      %p53 = scmp.ge.s32.totalorder %s52, 3
      %s54 = scalar_select %p53, 0, %s52
      %s55 = sadd.s32 1, %s46
      %s56 = scalar_select %p53, %s55, %s46
      %p57 = scmp.ge.s32.totalorder %s56, 2
      %s58 = scalar_select %p57, 0, %s56
      %s59 = smul.u32 %s46, 3
      %s60 = sadd.s32 %s59, %s47
      %s61 = sld [smem:[#allocation4 + %s60]]
      %s62 = smul.u32 %s58, 3
      %s63 = sadd.s32 %s62, %s54
      %s64 = sld [smem:[#allocation4 + %s63]]
      %s65 = ssub.s32 %s61, %s64
      %p66 = scmp.eq.s32.totalorder %s65, 0
      %s68 = sadd.s32 %s67, 1
      %s69 = scalar_select %p66, %s67, %s68
      %p72 = pneg %p66
      %p73 = scmp.eq.s32.totalorder %s39, 5
      %p74 = por %p72, %p73
      %p75 = scmp.ne.s32.totalorder %s67, %s70
      %p76 = scmp.eq.s32.totalorder %s39, 0
      %p77 = por %p75, %p76
      %p78 = scmp.ne.s32.totalorder %s67, %s70
      %p79 = scmp.eq.s32.totalorder %s44, 5
      %p80 = por %p78, %p79
      %p81 = scmp.ne.s32.totalorder %s70, %s71
      %p82 = scmp.eq.s32.totalorder %s44, 0
      %p83 = por %p81, %p82
      %p84 = scmp.ne.s32.totalorder %s70, %s71
      %p85 = scmp.eq.s32.totalorder %s45, 5
      %p86 = por %p84, %p85
      %p88 = scmp.ne.s32.totalorder %s71, %s87
      %p89 = scmp.eq.s32.totalorder %s45, 0
      %p90 = por %p88, %p89
      %s91 = smul.u32 %s46, 3
      %s92 = sadd.s32 %s91, %s47
      %s93 = sld [smem:[#allocation4 + %s92]]
      %s94 = smul.u32 %s58, 3
      %s95 = sadd.s32 %s94, %s54
      %s96 = sld [smem:[#allocation4 + %s95]]
      %s97 = ssub.s32 %s93, %s96
      %p98 = scmp.eq.s32.totalorder %s97, 0
      %s100 = sadd.s32 %s99, 1
      %s101 = scalar_select %p98, %s99, %s100
      %p104 = pneg %p98
      %p105 = scmp.eq.s32.totalorder %s39, 5
      %p106 = por %p104, %p105
      %p107 = scmp.ne.s32.totalorder %s99, %s102
      %p108 = scmp.eq.s32.totalorder %s39, 0
      %p109 = por %p107, %p108
      %p110 = scmp.ne.s32.totalorder %s99, %s102
      %p111 = scmp.eq.s32.totalorder %s44, 5
      %p112 = por %p110, %p111
      %p113 = scmp.ne.s32.totalorder %s102, %s103
      %p114 = scmp.eq.s32.totalorder %s44, 0
      %p115 = por %p113, %p114
      %p116 = scmp.ne.s32.totalorder %s102, %s103
      %p117 = scmp.eq.s32.totalorder %s45, 5
      %p118 = por %p116, %p117
      %p120 = scmp.ne.s32.totalorder %s103, %s119
      %p121 = scmp.eq.s32.totalorder %s45, 0
      %p122 = por %p120, %p121
      %s123 = smul.u32 %s46, 3
      %s124 = sadd.s32 %s123, %s47
      %s125 = sld [smem:[#allocation4 + %s124]]
      %s126 = smul.u32 %s58, 3
      %s127 = sadd.s32 %s126, %s54
      %s128 = sld [smem:[#allocation4 + %s127]]
      %s129 = ssub.s32 %s125, %s128
      %p130 = scmp.eq.s32.totalorder %s129, 0
      %s132 = sadd.s32 %s131, 1
      %s133 = scalar_select %p130, %s131, %s132
      %p136 = pneg %p130
      %p137 = scmp.eq.s32.totalorder %s39, 5
      %p138 = por %p136, %p137
      %p139 = scmp.ne.s32.totalorder %s131, %s134
      %p140 = scmp.eq.s32.totalorder %s39, 0
      %p141 = por %p139, %p140
      %p142 = scmp.ne.s32.totalorder %s131, %s134
      %p143 = scmp.eq.s32.totalorder %s44, 5
      %p144 = por %p142, %p143
      %p145 = scmp.ne.s32.totalorder %s134, %s135
      %p146 = scmp.eq.s32.totalorder %s44, 0
      %p147 = por %p145, %p146
      %p148 = scmp.ne.s32.totalorder %s134, %s135
      %p149 = scmp.eq.s32.totalorder %s45, 5
      %p150 = por %p148, %p149
      %p152 = scmp.ne.s32.totalorder %s135, %s151
      %p153 = scmp.eq.s32.totalorder %s45, 0
      %p154 = por %p152, %p153
      %s155 = ssub.s32 %s46, %s58
      %p156 = scmp.eq.s32.totalorder %s155, 0
      %s158 = sadd.s32 %s157, 1
      %s159 = scalar_select %p156, %s157, %s158
      %p162 = pneg %p156
      %p163 = scmp.eq.s32.totalorder %s39, 5
      %p164 = por %p162, %p163
      %p165 = scmp.ne.s32.totalorder %s157, %s160
      %p166 = scmp.eq.s32.totalorder %s39, 0
      %p167 = por %p165, %p166
      %p168 = scmp.ne.s32.totalorder %s157, %s160
      %p169 = scmp.eq.s32.totalorder %s44, 5
      %p170 = por %p168, %p169
      %p171 = scmp.ne.s32.totalorder %s160, %s161
      %p172 = scmp.eq.s32.totalorder %s44, 0
      %p173 = por %p171, %p172
      %p174 = scmp.ne.s32.totalorder %s160, %s161
      %p175 = scmp.eq.s32.totalorder %s45, 5
      %p176 = por %p174, %p175
      %p178 = scmp.ne.s32.totalorder %s161, %s177
      %p179 = scmp.eq.s32.totalorder %s45, 0
      %p180 = por %p178, %p179
      %s182 = sadd.s32 %s181, 1
      %p185 = scmp.eq.s32.totalorder %s39, 5
      %p186 = scmp.ne.s32.totalorder %s181, %s183
      %p187 = scmp.eq.s32.totalorder %s39, 0
      %p188 = por %p186, %p187
      %p189 = scmp.ne.s32.totalorder %s181, %s183
      %p190 = scmp.eq.s32.totalorder %s44, 5
      %p191 = por %p189, %p190
      %p192 = scmp.ne.s32.totalorder %s183, %s184
      %p193 = scmp.eq.s32.totalorder %s44, 0
      %p194 = por %p192, %p193
      %p195 = scmp.ne.s32.totalorder %s183, %s184
      %p196 = scmp.eq.s32.totalorder %s45, 5
      %p197 = por %p195, %p196
      %p199 = scmp.ne.s32.totalorder %s184, %s198
      %p200 = scmp.eq.s32.totalorder %s45, 0
      %p201 = por %p199, %p200
      %s203 = sadd.s32 %s202, 1
      %p206 = scmp.eq.s32.totalorder %s39, 5
      %p207 = scmp.ne.s32.totalorder %s202, %s204
      %p208 = scmp.eq.s32.totalorder %s39, 0
      %p209 = por %p207, %p208
      %p210 = scmp.ne.s32.totalorder %s202, %s204
      %p211 = scmp.eq.s32.totalorder %s44, 5
      %p212 = por %p210, %p211
      %p213 = scmp.ne.s32.totalorder %s204, %s205
      %p214 = scmp.eq.s32.totalorder %s44, 0
      %p215 = por %p213, %p214
      %p216 = scmp.ne.s32.totalorder %s204, %s205
      %p217 = scmp.eq.s32.totalorder %s45, 5
      %p218 = por %p216, %p217
      %p220 = scmp.ne.s32.totalorder %s205, %s219
      %p221 = scmp.eq.s32.totalorder %s45, 0
      %p222 = por %p220, %p221
      %s224 = sadd.s32 %s223, 1
      %p227 = scmp.eq.s32.totalorder %s39, 5
      %p228 = scmp.ne.s32.totalorder %s223, %s225
      %p229 = scmp.eq.s32.totalorder %s39, 0
      %p230 = por %p228, %p229
      %p231 = scmp.ne.s32.totalorder %s223, %s225
      %p232 = scmp.eq.s32.totalorder %s44, 5
      %p233 = por %p231, %p232
      %p234 = scmp.ne.s32.totalorder %s225, %s226
      %p235 = scmp.eq.s32.totalorder %s44, 0
      %p236 = por %p234, %p235
      %p237 = scmp.ne.s32.totalorder %s225, %s226
      %p238 = scmp.eq.s32.totalorder %s45, 5
      %p239 = por %p237, %p238
      %p241 = scmp.ne.s32.totalorder %s226, %s240
      %p242 = scmp.eq.s32.totalorder %s45, 0
      %p243 = por %p241, %p242
      %s245 = sadd.s32 %s244, 1
      %p248 = scmp.eq.s32.totalorder %s39, 5
      %p249 = scmp.ne.s32.totalorder %s244, %s246
      %p250 = scmp.eq.s32.totalorder %s39, 0
      %p251 = por %p249, %p250
      %p252 = scmp.ne.s32.totalorder %s244, %s246
      %p253 = scmp.eq.s32.totalorder %s44, 5
      %p254 = por %p252, %p253
      %p255 = scmp.ne.s32.totalorder %s246, %s247
      %p256 = scmp.eq.s32.totalorder %s44, 0
      %p257 = por %p255, %p256
      %p258 = scmp.ne.s32.totalorder %s246, %s247
      %p259 = scmp.eq.s32.totalorder %s45, 5
      %p260 = por %p258, %p259
      %p262 = scmp.ne.s32.totalorder %s247, %s261
      %p263 = scmp.eq.s32.totalorder %s45, 0
      %p264 = por %p262, %p263
      %s266 = sadd.s32 %s265, 1
      %p269 = scmp.eq.s32.totalorder %s39, 5
      %p270 = scmp.ne.s32.totalorder %s265, %s267
      %p271 = scmp.eq.s32.totalorder %s39, 0
      %p272 = por %p270, %p271
      %p273 = scmp.ne.s32.totalorder %s265, %s267
      %p274 = scmp.eq.s32.totalorder %s44, 5
      %p275 = por %p273, %p274
      %p276 = scmp.ne.s32.totalorder %s267, %s268
      %p277 = scmp.eq.s32.totalorder %s44, 0
      %p278 = por %p276, %p277
      %p279 = scmp.ne.s32.totalorder %s267, %s268
      %p280 = scmp.eq.s32.totalorder %s45, 5
      %p281 = por %p279, %p280
      %p283 = scmp.ne.s32.totalorder %s268, %s282
      %p284 = scmp.eq.s32.totalorder %s45, 0
      %p285 = por %p283, %p284
      %s287 = sadd.s32 %s286, 1
      %p290 = scmp.eq.s32.totalorder %s39, 5
      %p291 = scmp.ne.s32.totalorder %s286, %s288
      %p292 = scmp.eq.s32.totalorder %s39, 0
      %p293 = por %p291, %p292
      %p294 = scmp.ne.s32.totalorder %s286, %s288
      %p295 = scmp.eq.s32.totalorder %s44, 5
      %p296 = por %p294, %p295
      %p297 = scmp.ne.s32.totalorder %s288, %s289
      %p298 = scmp.eq.s32.totalorder %s44, 0
      %p299 = por %p297, %p298
      %p300 = scmp.ne.s32.totalorder %s288, %s289
      %p301 = scmp.eq.s32.totalorder %s45, 5
      %p302 = por %p300, %p301
      %p304 = scmp.ne.s32.totalorder %s289, %s303
      %p305 = scmp.eq.s32.totalorder %s45, 0
      %p306 = por %p304, %p305
      %s308 = sadd.s32 %s307, 1
      %p311 = scmp.eq.s32.totalorder %s39, 5
      %p312 = scmp.ne.s32.totalorder %s307, %s309
      %p313 = scmp.eq.s32.totalorder %s39, 0
      %p314 = por %p312, %p313
      %p315 = scmp.ne.s32.totalorder %s307, %s309
      %p316 = scmp.eq.s32.totalorder %s44, 5
      %p317 = por %p315, %p316
      %p318 = scmp.ne.s32.totalorder %s309, %s310
      %p319 = scmp.eq.s32.totalorder %s44, 0
      %p320 = por %p318, %p319
      %p321 = scmp.ne.s32.totalorder %s309, %s310
      %p322 = scmp.eq.s32.totalorder %s45, 5
      %p323 = por %p321, %p322
      %p325 = scmp.ne.s32.totalorder %s310, %s324
      %p326 = scmp.eq.s32.totalorder %s45, 0
      %p327 = por %p325, %p326
      %s329 = sadd.s32 %s328, 1
      %p332 = scmp.eq.s32.totalorder %s39, 5
      %p333 = scmp.ne.s32.totalorder %s328, %s330
      %p334 = scmp.eq.s32.totalorder %s39, 0
      %p335 = por %p333, %p334
      %p336 = scmp.ne.s32.totalorder %s328, %s330
      %p337 = scmp.eq.s32.totalorder %s44, 5
      %p338 = por %p336, %p337
      %p339 = scmp.ne.s32.totalorder %s330, %s331
      %p340 = scmp.eq.s32.totalorder %s44, 0
      %p341 = por %p339, %p340
      %p342 = scmp.ne.s32.totalorder %s330, %s331
      %p343 = scmp.eq.s32.totalorder %s45, 5
      %p344 = por %p342, %p343
      %p346 = scmp.ne.s32.totalorder %s331, %s345
      %p347 = scmp.eq.s32.totalorder %s45, 0
      %p348 = por %p346, %p347
      %s350 = sadd.s32 %s349, 1
      %p353 = scmp.eq.s32.totalorder %s39, 5
      %p354 = scmp.ne.s32.totalorder %s349, %s351
      %p355 = scmp.eq.s32.totalorder %s39, 0
      %p356 = por %p354, %p355
      %p357 = scmp.ne.s32.totalorder %s349, %s351
      %p358 = scmp.eq.s32.totalorder %s44, 5
      %p359 = por %p357, %p358
      %p360 = scmp.ne.s32.totalorder %s351, %s352
      %p361 = scmp.eq.s32.totalorder %s44, 0
      %p362 = por %p360, %p361
      %p363 = scmp.ne.s32.totalorder %s351, %s352
      %p364 = scmp.eq.s32.totalorder %s45, 5
      %p365 = por %p363, %p364
      %p367 = scmp.ne.s32.totalorder %s352, %s366
      %p368 = scmp.eq.s32.totalorder %s45, 0
      %p369 = por %p367, %p368
      %s370 = ssub.s32 %s46, %s58
      %p371 = scmp.eq.s32.totalorder %s370, 0
      %s373 = sadd.s32 %s372, 1
      %s374 = scalar_select %p371, %s372, %s373
      %p377 = pneg %p371
      %p378 = scmp.eq.s32.totalorder %s39, 5
      %p379 = por %p377, %p378
      %p380 = scmp.ne.s32.totalorder %s372, %s375
      %p381 = scmp.eq.s32.totalorder %s39, 0
      %p382 = por %p380, %p381
      %p383 = scmp.ne.s32.totalorder %s372, %s375
      %p384 = scmp.eq.s32.totalorder %s44, 5
      %p385 = por %p383, %p384
      %p386 = scmp.ne.s32.totalorder %s375, %s376
      %p387 = scmp.eq.s32.totalorder %s44, 0
      %p388 = por %p386, %p387
      %p389 = scmp.ne.s32.totalorder %s375, %s376
      %p390 = scmp.eq.s32.totalorder %s45, 5
      %p391 = por %p389, %p390
      %p393 = scmp.ne.s32.totalorder %s376, %s392
      %p394 = scmp.eq.s32.totalorder %s45, 0
      %p395 = por %p393, %p394
      %p396 = scmp.le.s32.totalorder 1, %s39
      %p397 = scmp.lt.s32.totalorder %s39, 7
      %p398 = pnand %p396, %p397
      %p399 = pneg %p398
      // Predicated region
      $region9: #{tpu_custom_call.1} parent=5 // pred_check
        _
      $region10: #{tpu_custom_call.1} parent=5 // pred_check_branch
        %401 = sbr.rel (%p398) target = $region12
      $region11: #{tpu_custom_call.1} parent=5 // pred_region
        %s402 = ssub.s32 %s39, 1
        // Predicated region
        $region13: #{tpu_custom_call.1} parent=11 // pred_check
          %p403 = pneg %p194
        $region14: #{tpu_custom_call.1} parent=11 // pred_check_branch
          %405 = sbr.rel (%p403) target = $region16
        $region15: #{tpu_custom_call.1} parent=11 // pred_region
          %s407 = ssub.s32 2048, 2048
          %408 = vsyncadd [#allocation10], %s407
          %s409 = sshll.u32 [#allocation9], 4
          %s410 = int_to_ptr.vmem [resolvable:$true] %s409
          %415 = dma.hbm_to_vmem [thread:$0]  %s6, 2048, %s410, [#allocation10], 64, 64, 4
        $region16: #{tpu_custom_call.1} parent=11 // pred_fallthru
          _
        // Predicated region
        $region17: #{tpu_custom_call.1} parent=11 // pred_check
          %p416 = pneg %p215
        $region18: #{tpu_custom_call.1} parent=11 // pred_check_branch
          %418 = sbr.rel (%p416) target = $region20
        $region19: #{tpu_custom_call.1} parent=11 // pred_region
          _
        $region20: #{tpu_custom_call.1} parent=11 // pred_fallthru
          _
        // Predicated region
        $region21: #{tpu_custom_call.1} parent=11 // pred_check
          %p419 = pneg %p236
        $region22: #{tpu_custom_call.1} parent=11 // pred_check_branch
          %421 = sbr.rel (%p419) target = $region24
        $region23: #{tpu_custom_call.1} parent=11 // pred_region
          _
        $region24: #{tpu_custom_call.1} parent=11 // pred_fallthru
          _
        // Predicated region
        $region25: #{tpu_custom_call.1} parent=11 // pred_check
          %p422 = pneg %p257
        $region26: #{tpu_custom_call.1} parent=11 // pred_check_branch
          %424 = sbr.rel (%p422) target = $region28
        $region27: #{tpu_custom_call.1} parent=11 // pred_region
          %s426 = ssub.s32 1024, 1024
          %427 = vsyncadd [#allocation10], %s426
          %s428 = sshll.u32 [#allocation11], 4
          %s429 = int_to_ptr.vmem [resolvable:$true] %s428
          %434 = dma.hbm_to_vmem [thread:$0]  %s9, 1024, %s429, [#allocation10], 64, 64, 4
        $region28: #{tpu_custom_call.1} parent=11 // pred_fallthru
          _
        // Predicated region
        $region29: #{tpu_custom_call.1} parent=11 // pred_check
          %p435 = pneg %p278
        $region30: #{tpu_custom_call.1} parent=11 // pred_check_branch
          %437 = sbr.rel (%p435) target = $region32
        $region31: #{tpu_custom_call.1} parent=11 // pred_region
          _
        $region32: #{tpu_custom_call.1} parent=11 // pred_fallthru
          _
        // Predicated region
        $region33: #{tpu_custom_call.1} parent=11 // pred_check
          %p438 = pneg %p299
        $region34: #{tpu_custom_call.1} parent=11 // pred_check_branch
          %440 = sbr.rel (%p438) target = $region36
        $region35: #{tpu_custom_call.1} parent=11 // pred_region
          %s442 = ssub.s32 2048, 2048
          %443 = vsyncadd [#allocation13], %s442
          %s444 = sshll.u32 [#allocation12], 4
          %s445 = int_to_ptr.vmem [resolvable:$true] %s444
          %450 = dma.hbm_to_vmem [thread:$0]  %s11, 2048, %s445, [#allocation13], 64, 64, 4
        $region36: #{tpu_custom_call.1} parent=11 // pred_fallthru
          _
        // Predicated region
        $region37: #{tpu_custom_call.1} parent=11 // pred_check
          %p451 = pneg %p320
        $region38: #{tpu_custom_call.1} parent=11 // pred_check_branch
          %453 = sbr.rel (%p451) target = $region40
        $region39: #{tpu_custom_call.1} parent=11 // pred_region
          _
        $region40: #{tpu_custom_call.1} parent=11 // pred_fallthru
          _
        // Predicated region
        $region41: #{tpu_custom_call.1} parent=11 // pred_check
          %p454 = pneg %p341
        $region42: #{tpu_custom_call.1} parent=11 // pred_check_branch
          %456 = sbr.rel (%p454) target = $region44
        $region43: #{tpu_custom_call.1} parent=11 // pred_region
          %s458 = ssub.s32 1024, 1024
          %459 = vsyncadd [#allocation13], %s458
          %s460 = sshll.u32 [#allocation14], 4
          %s461 = int_to_ptr.vmem [resolvable:$true] %s460
          %466 = dma.hbm_to_vmem [thread:$0]  %s13, 1024, %s461, [#allocation13], 64, 64, 4
        $region44: #{tpu_custom_call.1} parent=11 // pred_fallthru
          _
        // Predicated region
        $region45: #{tpu_custom_call.1} parent=11 // pred_check
          %p467 = pneg %p362
        $region46: #{tpu_custom_call.1} parent=11 // pred_check_branch
          %469 = sbr.rel (%p467) target = $region48
        $region47: #{tpu_custom_call.1} parent=11 // pred_region
          _
        $region48: #{tpu_custom_call.1} parent=11 // pred_fallthru
          _
      $region12: #{tpu_custom_call.1} parent=5 // pred_fallthru
        _
      %p470 = scmp.lt.s32.totalorder %s39, 6
      // Predicated region
      $region49: #{tpu_custom_call.1} parent=5 // pred_check
        %p471 = pneg %p470
      $region50: #{tpu_custom_call.1} parent=5 // pred_check_branch
        %473 = sbr.rel (%p471) target = $region52
      $region51: #{tpu_custom_call.1} parent=5 // pred_region
        // Predicated region
        $region53: #{tpu_custom_call.1} parent=51 // pred_check
          %p474 = pneg %p77
        $region54: #{tpu_custom_call.1} parent=51 // pred_check_branch
          %476 = sbr.rel (%p474) target = $region56
        $region55: #{tpu_custom_call.1} parent=51 // pred_region
          %s477 = smul.u32 %s46, 3
          %s478 = sadd.s32 %s477, %s47
          %s479 = sld [smem:[#allocation4 + %s478]]
          %s480 = smul.u32 16, %s479
          %p481 = scmp.lt.s32.totalorder %s480, 95
          %s482 = scalar_select %p481, %s480, 95
          %s483 = smul.addr %s482, 2
          %s484 = smul.addr %s483, 4
          %s485 = scalar_lea.vmem %s2, %s484
          %s486 = smul.u32 %s46, 3
          %s487 = sadd.s32 %s486, %s47
          %s488 = sld [smem:[#allocation4 + %s487]]
          %s489 = smul.u32 16, %s488
        $region56: #{tpu_custom_call.1} parent=51 // pred_fallthru
          _
        // Predicated region
        $region57: #{tpu_custom_call.1} parent=51 // pred_check
          %p490 = pneg %p109
        $region58: #{tpu_custom_call.1} parent=51 // pred_check_branch
          %492 = sbr.rel (%p490) target = $region60
        $region59: #{tpu_custom_call.1} parent=51 // pred_region
          %s493 = smul.u32 %s46, 3
          %s494 = sadd.s32 %s493, %s47
          %s495 = sld [smem:[#allocation4 + %s494]]
          %s496 = smul.u32 16, %s495
          %p497 = scmp.lt.s32.totalorder %s496, 95
          %s498 = scalar_select %p497, %s496, 95
          %s499 = smul.addr %s498, 8
          %s500 = scalar_lea.vmem %s3, %s499
          %s501 = smul.u32 %s46, 3
          %s502 = sadd.s32 %s501, %s47
          %s503 = sld [smem:[#allocation4 + %s502]]
          %s504 = smul.u32 16, %s503
        $region60: #{tpu_custom_call.1} parent=51 // pred_fallthru
          _
        // Predicated region
        $region61: #{tpu_custom_call.1} parent=51 // pred_check
          %p505 = pneg %p141
        $region62: #{tpu_custom_call.1} parent=51 // pred_check_branch
          %507 = sbr.rel (%p505) target = $region64
        $region63: #{tpu_custom_call.1} parent=51 // pred_region
          %s508 = smul.u32 %s46, 3
          %s509 = sadd.s32 %s508, %s47
          %s510 = sld [smem:[#allocation4 + %s509]]
          %p511 = scmp.lt.s32.totalorder %s510, 5
          %s512 = scalar_select %p511, %s510, 5
          %s513 = scalar_lea.vmem %s4, %s512
          %s514 = smul.u32 %s46, 3
          %s515 = sadd.s32 %s514, %s47
          %s516 = sld [smem:[#allocation4 + %s515]]
        $region64: #{tpu_custom_call.1} parent=51 // pred_fallthru
          _
        // Predicated region
        $region65: #{tpu_custom_call.1} parent=51 // pred_check
          %p517 = pneg %p167
        $region66: #{tpu_custom_call.1} parent=51 // pred_check_branch
          %519 = sbr.rel (%p517) target = $region68
        $region67: #{tpu_custom_call.1} parent=51 // pred_region
          %s520 = sand.u32 %s157, 1
          %s521 = scalar_lea.sflag [#allocation7], %s520
          %s522 = sand.u32 %s157, 1
          %s523 = smul.addr %s522, 16
          %s524 = scalar_lea.vmem [#allocation6], %s523
          %s525 = smul.u32 4, %s46
          %s527 = ssub.s32 256, 256
          %528 = vsyncadd %s521, %s527
          %s529 = smul.addr %s525, 64
          %s530 = scalar_lea.hbm %s5, %s529
          %s531 = sshll.u32 %s524, 4
          %s532 = int_to_ptr.vmem [resolvable:$true] %s531
          %537 = dma.hbm_to_vmem [thread:$0]  %s530, 256, %s532, %s521, 64, 64, 4
        $region68: #{tpu_custom_call.1} parent=51 // pred_fallthru
          _
      $region52: #{tpu_custom_call.1} parent=5 // pred_fallthru
        _
      %p538 = scmp.le.s32.totalorder 1, %s39
      %p539 = scmp.lt.s32.totalorder %s39, 7
      %p540 = pnand %p538, %p539
      %p541 = pneg %p540
      // Predicated region
      $region69: #{tpu_custom_call.1} parent=5 // pred_check
        _
      $region70: #{tpu_custom_call.1} parent=5 // pred_check_branch
        %543 = sbr.rel (%p540) target = $region72
      $region71: #{tpu_custom_call.1} parent=5 // pred_region
        %s544 = ssub.s32 %s39, 1
        %s545 = sand.u32 %s160, 1
        %s546 = scalar_lea.sflag [#allocation7], %s545
        %s547 = sand.u32 %s160, 1
        %s548 = smul.addr %s547, 16
        %s549 = scalar_lea.vmem [#allocation6], %s548
        // Predicated region
        $region73: #{tpu_custom_call.1} parent=71 // pred_check
          %p550 = pneg %p173
        $region74: #{tpu_custom_call.1} parent=71 // pred_check_branch
          %552 = sbr.rel (%p550) target = $region76
        $region75: #{tpu_custom_call.1} parent=71 // pred_region
          %553 = dma.done %s546, 256
        $region76: #{tpu_custom_call.1} parent=71 // pred_fallthru
          _
        // Predicated region
        $region77: #{tpu_custom_call.1} parent=71 // pred_check
          %p554 = pneg %p194
        $region78: #{tpu_custom_call.1} parent=71 // pred_check_branch
          %556 = sbr.rel (%p554) target = $region80
        $region79: #{tpu_custom_call.1} parent=71 // pred_region
          %557 = dma.done [#allocation10], 2048
        $region80: #{tpu_custom_call.1} parent=71 // pred_fallthru
          _
        // Predicated region
        $region81: #{tpu_custom_call.1} parent=71 // pred_check
          %p558 = pneg %p257
        $region82: #{tpu_custom_call.1} parent=71 // pred_check_branch
          %560 = sbr.rel (%p558) target = $region84
        $region83: #{tpu_custom_call.1} parent=71 // pred_region
          %561 = dma.done [#allocation10], 1024
        $region84: #{tpu_custom_call.1} parent=71 // pred_fallthru
          _
        // Predicated region
        $region85: #{tpu_custom_call.1} parent=71 // pred_check
          %p562 = pneg %p299
        $region86: #{tpu_custom_call.1} parent=71 // pred_check_branch
          %564 = sbr.rel (%p562) target = $region88
        $region87: #{tpu_custom_call.1} parent=71 // pred_region
          %565 = dma.done [#allocation13], 2048
        $region88: #{tpu_custom_call.1} parent=71 // pred_fallthru
          _
        // Predicated region
        $region89: #{tpu_custom_call.1} parent=71 // pred_check
          %p566 = pneg %p341
        $region90: #{tpu_custom_call.1} parent=71 // pred_check_branch
          %568 = sbr.rel (%p566) target = $region92
        $region91: #{tpu_custom_call.1} parent=71 // pred_region
          %569 = dma.done [#allocation13], 1024
        $region92: #{tpu_custom_call.1} parent=71 // pred_fallthru
          _
        %s570 = smul.u32 %s48, 3
        %s571 = sadd.s32 %s570, %s49
        %s572 = sld [smem:[#allocation4 + %s571]]
        %s573 = smul.u32 16, %s572
        %p574 = scmp.lt.s32.totalorder %s573, 95
        %s575 = scalar_select %p574, %s573, 95
        %s576 = smul.addr %s575, 2
        %s577 = smul.addr %s576, 4
        %s578 = scalar_lea.vmem %s2, %s577
        %p579 = pneg %p83
        %p580 = pneg %p80
        %s581 = smul.u32 %s48, 3
        %s582 = sadd.s32 %s581, %s49
        %s583 = sld [smem:[#allocation4 + %s582]]
        %s584 = smul.u32 16, %s583
        %p585 = scmp.lt.s32.totalorder %s584, 95
        %s586 = scalar_select %p585, %s584, 95
        %s587 = smul.addr %s586, 8
        %s588 = scalar_lea.vmem %s3, %s587
        %p589 = pneg %p115
        %p590 = pneg %p112
        %s591 = smul.u32 %s48, 3
        %s592 = sadd.s32 %s591, %s49
        %s593 = sld [smem:[#allocation4 + %s592]]
        %p594 = scmp.lt.s32.totalorder %s593, 5
        %s595 = scalar_select %p594, %s593, 5
        %s596 = scalar_lea.vmem %s4, %s595
        %p597 = pneg %p147
        %p598 = pneg %p144
        %s599 = sand.u32 %s160, 1
        %s600 = scalar_lea.sflag [#allocation7], %s599
        %s601 = sand.u32 %s160, 1
        %s602 = smul.addr %s601, 16
        %s603 = scalar_lea.vmem [#allocation6], %s602
        %p604 = pneg %p173
        %p605 = pneg %p170
        %p606 = pneg %p194
        %p607 = pneg %p191
        %p608 = pneg %p215
        %p609 = pneg %p212
        %p610 = pneg %p236
        %p611 = pneg %p233
        %p612 = pneg %p257
        %p613 = pneg %p254
        %p614 = pneg %p278
        %p615 = pneg %p275
        %p616 = pneg %p299
        %p617 = pneg %p296
        %p618 = pneg %p320
        %p619 = pneg %p317
        %p620 = pneg %p341
        %p621 = pneg %p338
        %p622 = pneg %p362
        %p623 = pneg %p359
        %p624 = pneg %p388
        %p625 = pneg %p385
        %s626 = sand.u32 %s375, 1
        %s627 = scalar_lea.sflag [#allocation8], %s626
        %s628 = sand.u32 %s375, 1
        %s629 = smul.addr %s628, 32
        %s630 = scalar_lea.vmem [#allocation15], %s629
        %s631 = smul.u32 %s48, 3
        %s632 = sadd.s32 %s631, %s49
        %s633 = sld [smem:[#allocation4 + %s632]]
        %s634 = smul.u32 16, %s633
        %p635 = scmp.lt.s32.totalorder %s634, 95
        %s636 = scalar_select %p635, %s634, 95
        %s637 = smul.addr %s636, 2
        %s638 = smul.addr %s637, 4
        %s639 = scalar_lea.vmem %s2, %s638
        %s640 = smul.u32 %s48, 3
        %s641 = sadd.s32 %s640, %s49
        %s642 = sld [smem:[#allocation4 + %s641]]
        %s643 = smul.u32 16, %s642
        %s644 = smul.u32 %s48, 3
        %s645 = sadd.s32 %s644, %s49
        %s646 = sld [smem:[#allocation4 + %s645]]
        %s647 = smul.u32 16, %s646
        %p648 = scmp.lt.s32.totalorder %s647, 95
        %s649 = scalar_select %p648, %s647, 95
        %s650 = smul.addr %s649, 8
        %s651 = scalar_lea.vmem %s3, %s650
        %s652 = smul.u32 %s48, 3
        %s653 = sadd.s32 %s652, %s49
        %s654 = sld [smem:[#allocation4 + %s653]]
        %s655 = smul.u32 16, %s654
        %s656 = smul.u32 %s48, 3
        %s657 = sadd.s32 %s656, %s49
        %s658 = sld [smem:[#allocation4 + %s657]]
        %p659 = scmp.lt.s32.totalorder %s658, 5
        %s660 = scalar_select %p659, %s658, 5
        %s661 = scalar_lea.vmem %s4, %s660
        %s662 = smul.u32 %s48, 3
        %s663 = sadd.s32 %s662, %s49
        %s664 = sld [smem:[#allocation4 + %s663]]
        %s665 = smul.u32 4, %s48
        %s666 = smul.u32 4, %s48
        %p668 = scmp.eq.s32.totalorder %s49, 0
        // Predicated region
        $region93: #{tpu_custom_call.1} parent=71 // pred_check
          %p669 = pneg %p668
        $region94: #{tpu_custom_call.1} parent=71 // pred_check_branch
          %671 = sbr.rel (%p669) target = $region96
        $region95: #{tpu_custom_call.1} parent=71 // pred_region
          %672 = vst [vmem:[#allocation2] sm:$0xff] 0.0
          %673 = vst [vmem:[#allocation2 + $0x8] sm:$0xff] 0.0
          %674 = vst [vmem:[#allocation2 + $0x10] sm:$0xff] 0.0
          %675 = vst [vmem:[#allocation2 + $0x18] sm:$0xff] 0.0
        $region96: #{tpu_custom_call.1} parent=71 // pred_fallthru
          _
        %s676 = sld [smem:[#allocation5 + %s48]]
        %p677 = scmp.lt.s32.totalorder %s49, %s676
        // Predicated region
        $region97: #{tpu_custom_call.1} parent=71 // pred_check
          %p678 = pneg %p677
        $region98: #{tpu_custom_call.1} parent=71 // pred_check_branch
          %680 = sbr.rel (%p678) target = $region100
        $region99: #{tpu_custom_call.1} parent=71 // pred_region
          %v681 = vld [vmem:[%s639] sm:$0xff]
          %v682 = vld [vmem:[%s639 + $0x8] sm:$0xff]
          %v683 = vld [vmem:[%s639 + $0x10] sm:$0xff]
          %v684 = vld [vmem:[%s639 + $0x18] sm:$0xff]
          %v685 = vld [vmem:[%s639 + $0x20] sm:$0xff]
          %v686 = vld [vmem:[%s639 + $0x28] sm:$0xff]
          %v687 = vld [vmem:[%s639 + $0x30] sm:$0xff]
          %v688 = vld [vmem:[%s639 + $0x38] sm:$0xff]
          %v689 = vld [vmem:[%s639 + $0x40] sm:$0xff]
          %v690 = vld [vmem:[%s639 + $0x48] sm:$0xff]
          %v691 = vld [vmem:[%s639 + $0x50] sm:$0xff]
          %v692 = vld [vmem:[%s639 + $0x58] sm:$0xff]
          %v693 = vld [vmem:[%s639 + $0x60] sm:$0xff]
          %v694 = vld [vmem:[%s639 + $0x68] sm:$0xff]
          %v695 = vld [vmem:[%s639 + $0x70] sm:$0xff]
          %v696 = vld [vmem:[%s639 + $0x78] sm:$0xff]
          %v697 = vld [vmem:[#allocation9] sm:$0xf]
          %v698 = vld [vmem:[#allocation9 + $0x4] sm:$0xf]
          %v699 = vld [vmem:[#allocation9 + $0x8] sm:$0xf]
          %v700 = vld [vmem:[#allocation9 + $0xc] sm:$0xf]
          %v701 = vld [vmem:[#allocation9 + $0x10] sm:$0xf]
          %v702 = vld [vmem:[#allocation9 + $0x14] sm:$0xf]
          %v703 = vld [vmem:[#allocation9 + $0x18] sm:$0xf]
          %v704 = vld [vmem:[#allocation9 + $0x1c] sm:$0xf]
          %v705 = vld [vmem:[#allocation9 + $0x20] sm:$0xf]
          %v706 = vld [vmem:[#allocation9 + $0x24] sm:$0xf]
          %v707 = vld [vmem:[#allocation9 + $0x28] sm:$0xf]
          %v708 = vld [vmem:[#allocation9 + $0x2c] sm:$0xf]
          %v709 = vld [vmem:[#allocation9 + $0x30] sm:$0xf]
          %v710 = vld [vmem:[#allocation9 + $0x34] sm:$0xf]
          %v711 = vld [vmem:[#allocation9 + $0x38] sm:$0xf]
          %v712 = vld [vmem:[#allocation9 + $0x3c] sm:$0xf]
          %v713 = vld [vmem:[#allocation9 + $0x40] sm:$0xf]
          %v714 = vld [vmem:[#allocation9 + $0x44] sm:$0xf]
          %v715 = vld [vmem:[#allocation9 + $0x48] sm:$0xf]
          %v716 = vld [vmem:[#allocation9 + $0x4c] sm:$0xf]
          %v717 = vld [vmem:[#allocation9 + $0x50] sm:$0xf]
          %v718 = vld [vmem:[#allocation9 + $0x54] sm:$0xf]
          %v719 = vld [vmem:[#allocation9 + $0x58] sm:$0xf]
          %v720 = vld [vmem:[#allocation9 + $0x5c] sm:$0xf]
          %v721 = vld [vmem:[#allocation9 + $0x60] sm:$0xf]
          %v722 = vld [vmem:[#allocation9 + $0x64] sm:$0xf]
          %v723 = vld [vmem:[#allocation9 + $0x68] sm:$0xf]
          %v724 = vld [vmem:[#allocation9 + $0x6c] sm:$0xf]
          %v725 = vld [vmem:[#allocation9 + $0x70] sm:$0xf]
          %v726 = vld [vmem:[#allocation9 + $0x74] sm:$0xf]
          %v727 = vld [vmem:[#allocation9 + $0x78] sm:$0xf]
          %v728 = vld [vmem:[#allocation9 + $0x7c] sm:$0xf]
          %v729 = vld [vmem:[%s651] sm:$0xff]
          %v730 = vld [vmem:[%s651 + $0x8] sm:$0xff]
          %v731 = vld [vmem:[%s651 + $0x10] sm:$0xff]
          %v732 = vld [vmem:[%s651 + $0x18] sm:$0xff]
          %v733 = vld [vmem:[%s651 + $0x20] sm:$0xff]
          %v734 = vld [vmem:[%s651 + $0x28] sm:$0xff]
          %v735 = vld [vmem:[%s651 + $0x30] sm:$0xff]
          %v736 = vld [vmem:[%s651 + $0x38] sm:$0xff]
          %v737 = vld [vmem:[%s651 + $0x40] sm:$0xff]
          %v738 = vld [vmem:[%s651 + $0x48] sm:$0xff]
          %v739 = vld [vmem:[%s651 + $0x50] sm:$0xff]
          %v740 = vld [vmem:[%s651 + $0x58] sm:$0xff]
          %v741 = vld [vmem:[%s651 + $0x60] sm:$0xff]
          %v742 = vld [vmem:[%s651 + $0x68] sm:$0xff]
          %v743 = vld [vmem:[%s651 + $0x70] sm:$0xff]
          %v744 = vld [vmem:[%s651 + $0x78] sm:$0xff]
          %v745 = vld [vmem:[%s7] sm:$0x1]
          %747 = vset.pattern.permute.xlu0 0
          %748 = vperm.xlu0 %747, %v729
          %v749 = vpop.permute.xlu0 %748
          %752 = vset.pattern.permute.xlu0 0
          %753 = vperm.xlu0 %752, %v730
          %v754 = vpop.permute.xlu0 %753
          %757 = vset.pattern.permute.xlu0 0
          %758 = vperm.xlu0 %757, %v731
          %v759 = vpop.permute.xlu0 %758
          %762 = vset.pattern.permute.xlu0 0
          %763 = vperm.xlu0 %762, %v732
          %v764 = vpop.permute.xlu0 %763
          %767 = vset.pattern.permute.xlu0 0
          %768 = vperm.xlu0 %767, %v733
          %v769 = vpop.permute.xlu0 %768
          %772 = vset.pattern.permute.xlu0 0
          %773 = vperm.xlu0 %772, %v734
          %v774 = vpop.permute.xlu0 %773
          %777 = vset.pattern.permute.xlu0 0
          %778 = vperm.xlu0 %777, %v735
          %v779 = vpop.permute.xlu0 %778
          %782 = vset.pattern.permute.xlu0 0
          %783 = vperm.xlu0 %782, %v736
          %v784 = vpop.permute.xlu0 %783
          %787 = vset.pattern.permute.xlu0 0
          %788 = vperm.xlu0 %787, %v737
          %v789 = vpop.permute.xlu0 %788
          %792 = vset.pattern.permute.xlu0 0
          %793 = vperm.xlu0 %792, %v738
          %v794 = vpop.permute.xlu0 %793
          %797 = vset.pattern.permute.xlu0 0
          %798 = vperm.xlu0 %797, %v739
          %v799 = vpop.permute.xlu0 %798
          %802 = vset.pattern.permute.xlu0 0
          %803 = vperm.xlu0 %802, %v740
          %v804 = vpop.permute.xlu0 %803
          %807 = vset.pattern.permute.xlu0 0
          %808 = vperm.xlu0 %807, %v741
          %v809 = vpop.permute.xlu0 %808
          %812 = vset.pattern.permute.xlu0 0
          %813 = vperm.xlu0 %812, %v742
          %v814 = vpop.permute.xlu0 %813
          %817 = vset.pattern.permute.xlu0 0
          %818 = vperm.xlu0 %817, %v743
          %v819 = vpop.permute.xlu0 %818
          %822 = vset.pattern.permute.xlu0 0
          %823 = vperm.xlu0 %822, %v744
          %v824 = vpop.permute.xlu0 %823
          %v827 = vlaneseq
          %v828 = vshrl.u32 %v827, 7
          %v829 = vsub.s32 0, %v828
          %v830 = vrot.slane %v745, %v829
          %v832 = vmul.f32 %v749, %v830
          %v833 = vmul.f32 %v754, %v830
          %v834 = vmul.f32 %v759, %v830
          %v835 = vmul.f32 %v764, %v830
          %v836 = vmul.f32 %v769, %v830
          %v837 = vmul.f32 %v774, %v830
          %v838 = vmul.f32 %v779, %v830
          %v839 = vmul.f32 %v784, %v830
          %v840 = vmul.f32 %v789, %v830
          %v841 = vmul.f32 %v794, %v830
          %v842 = vmul.f32 %v799, %v830
          %v843 = vmul.f32 %v804, %v830
          %v844 = vmul.f32 %v809, %v830
          %v845 = vmul.f32 %v814, %v830
          %v846 = vmul.f32 %v819, %v830
          %v847 = vmul.f32 %v824, %v830
          %v864 = vunpack.c.l.b16 %v681
          %v865 = vunpack.c.h.b16 %v681
          %v866 = vunpack.c.l.b16 %v682
          %v867 = vunpack.c.h.b16 %v682
          %v868 = vunpack.c.l.b16 %v683
          %v869 = vunpack.c.h.b16 %v683
          %v870 = vunpack.c.l.b16 %v684
          %v871 = vunpack.c.h.b16 %v684
          %v872 = vunpack.c.l.b16 %v685
          %v873 = vunpack.c.h.b16 %v685
          %v874 = vunpack.c.l.b16 %v686
          %v875 = vunpack.c.h.b16 %v686
          %v876 = vunpack.c.l.b16 %v687
          %v877 = vunpack.c.h.b16 %v687
          %v878 = vunpack.c.l.b16 %v688
          %v879 = vunpack.c.h.b16 %v688
          %v880 = vunpack.c.l.b16 %v689
          %v881 = vunpack.c.h.b16 %v689
          %v882 = vunpack.c.l.b16 %v690
          %v883 = vunpack.c.h.b16 %v690
          %v884 = vunpack.c.l.b16 %v691
          %v885 = vunpack.c.h.b16 %v691
          %v886 = vunpack.c.l.b16 %v692
          %v887 = vunpack.c.h.b16 %v692
          %v888 = vunpack.c.l.b16 %v693
          %v889 = vunpack.c.h.b16 %v693
          %v890 = vunpack.c.l.b16 %v694
          %v891 = vunpack.c.h.b16 %v694
          %v892 = vunpack.c.l.b16 %v695
          %v893 = vunpack.c.h.b16 %v695
          %v894 = vunpack.c.l.b16 %v696
          %v895 = vunpack.c.h.b16 %v696
          %v896 = vpack.c.b16 %v866, %v864
          %v897 = vpack.c.b16 %v867, %v865
          %v898 = vpack.c.b16 %v870, %v868
          %v899 = vpack.c.b16 %v871, %v869
          %v900 = vpack.c.b16 %v874, %v872
          %v901 = vpack.c.b16 %v875, %v873
          %v902 = vpack.c.b16 %v878, %v876
          %v903 = vpack.c.b16 %v879, %v877
          %v904 = vpack.c.b16 %v882, %v880
          %v905 = vpack.c.b16 %v883, %v881
          %v906 = vpack.c.b16 %v886, %v884
          %v907 = vpack.c.b16 %v887, %v885
          %v908 = vpack.c.b16 %v890, %v888
          %v909 = vpack.c.b16 %v891, %v889
          %v910 = vpack.c.b16 %v894, %v892
          %v911 = vpack.c.b16 %v895, %v893
          %v960 = vunpack.c.l.b16 %v697
          %v961 = vunpack.c.l.b16 %v698
          %v962 = vunpack.c.l.b16 %v699
          %v963 = vunpack.c.l.b16 %v700
          %v964 = vunpack.c.l.b16 %v701
          %v965 = vunpack.c.l.b16 %v702
          %v966 = vunpack.c.l.b16 %v703
          %v967 = vunpack.c.l.b16 %v704
          %v968 = vunpack.c.l.b16 %v705
          %v969 = vunpack.c.l.b16 %v706
          %v970 = vunpack.c.l.b16 %v707
          %v971 = vunpack.c.l.b16 %v708
          %v972 = vunpack.c.l.b16 %v709
          %v973 = vunpack.c.l.b16 %v710
          %v974 = vunpack.c.l.b16 %v711
          %v975 = vunpack.c.l.b16 %v712
          %v976 = vunpack.c.l.b16 %v713
          %v977 = vunpack.c.l.b16 %v714
          %v978 = vunpack.c.l.b16 %v715
          %v979 = vunpack.c.l.b16 %v716
          %v980 = vunpack.c.l.b16 %v717
          %v981 = vunpack.c.l.b16 %v718
          %v982 = vunpack.c.l.b16 %v719
          %v983 = vunpack.c.l.b16 %v720
          %v984 = vunpack.c.l.b16 %v721
          %v985 = vunpack.c.l.b16 %v722
          %v986 = vunpack.c.l.b16 %v723
          %v987 = vunpack.c.l.b16 %v724
          %v988 = vunpack.c.l.b16 %v725
          %v989 = vunpack.c.l.b16 %v726
          %v990 = vunpack.c.l.b16 %v727
          %v991 = vunpack.c.l.b16 %v728
          %v992 = vpack.c.b16 %v961, %v960
          %v993 = vpack.c.b16 %v963, %v962
          %v994 = vpack.c.b16 %v965, %v964
          %v995 = vpack.c.b16 %v967, %v966
          %v996 = vpack.c.b16 %v969, %v968
          %v997 = vpack.c.b16 %v971, %v970
          %v998 = vpack.c.b16 %v973, %v972
          %v999 = vpack.c.b16 %v975, %v974
          %v1000 = vpack.c.b16 %v977, %v976
          %v1001 = vpack.c.b16 %v979, %v978
          %v1002 = vpack.c.b16 %v981, %v980
          %v1003 = vpack.c.b16 %v983, %v982
          %v1004 = vpack.c.b16 %v985, %v984
          %v1005 = vpack.c.b16 %v987, %v986
          %v1006 = vpack.c.b16 %v989, %v988
          %v1007 = vpack.c.b16 %v991, %v990
          %1024 = vmatprep.subr.bf16.mxu0 0
          %1025 = vmatpush1.bf16.msra.mxu0 %v992
          %1026 = vmatprep.subr.bf16.mxu0 0
          %1027 = vmatpush1.bf16.msra.mxu0 %v993
          %1028 = vmatprep.subr.bf16.mxu0 0
          %1029 = vmatpush1.bf16.msra.mxu0 %v994
          %1030 = vmatprep.subr.bf16.mxu0 0
          %1031 = vmatpush1.bf16.msra.mxu0 %v995
          %1032 = vmatprep.subr.bf16.mxu0 0
          %1033 = vmatpush1.bf16.msra.mxu0 %v996
          %1034 = vmatprep.subr.bf16.mxu0 0
          %1035 = vmatpush1.bf16.msra.mxu0 %v997
          %1036 = vmatprep.subr.bf16.mxu0 0
          %1037 = vmatpush1.bf16.msra.mxu0 %v998
          %1038 = vmatprep.subr.bf16.mxu0 0
          %1039 = vmatpush1.bf16.msra.mxu0 %v999
          %1040 = vmatprep.subr.bf16.mxu0 0
          %1041 = vmatpush1.bf16.msra.mxu0 %v1000
          %1042 = vmatprep.subr.bf16.mxu0 0
          %1043 = vmatpush1.bf16.msra.mxu0 %v1001
          %1044 = vmatprep.subr.bf16.mxu0 0
          %1045 = vmatpush1.bf16.msra.mxu0 %v1002
          %1046 = vmatprep.subr.bf16.mxu0 0
          %1047 = vmatpush1.bf16.msra.mxu0 %v1003
          %1048 = vmatprep.subr.bf16.mxu0 0
          %1049 = vmatpush1.bf16.msra.mxu0 %v1004
          %1050 = vmatprep.subr.bf16.mxu0 0
          %1051 = vmatpush1.bf16.msra.mxu0 %v1005
          %1052 = vmatprep.subr.bf16.mxu0 0
          %1053 = vmatpush1.bf16.msra.mxu0 %v1006
          %1054 = vmatprep.subr.bf16.mxu0 0
          %1055 = vmatpush1.bf16.msra.mxu0 %v1007
          %1056 = vmatprep.mubr.bf16.mxu0 %v897
          %1057 = vmatmul.mubr.bf16.gmra.mrb[0].mxu0 %v896
          %v1058 = vpop.f32.mrb[0].mxu0
          %v1059 = vadd.f32 %v832, %v1058
          %v1060 = vpop.f32.mrb[0].mxu0
          %v1061 = vpop.f32.mrb[0].mxu0
          %v1062 = vadd.f32 %v833, %v1061
          %v1063 = vpop.f32.mrb[0].mxu0
          %1064 = vmatprep.mubr.bf16.mxu0 %v899
          %1065 = vmatmul.mubr.bf16.gmra.mrb[0].mxu0 %v898
          %v1066 = vpop.f32.mrb[0].mxu0
          %v1067 = vadd.f32 %v834, %v1066
          %v1068 = vpop.f32.mrb[0].mxu0
          %v1069 = vpop.f32.mrb[0].mxu0
          %v1070 = vadd.f32 %v835, %v1069
          %v1071 = vpop.f32.mrb[0].mxu0
          %1072 = vmatprep.mubr.bf16.mxu0 %v901
          %1073 = vmatmul.mubr.bf16.gmra.mrb[0].mxu0 %v900
          %v1074 = vpop.f32.mrb[0].mxu0
          %v1075 = vadd.f32 %v836, %v1074
          %v1076 = vpop.f32.mrb[0].mxu0
          %v1077 = vpop.f32.mrb[0].mxu0
          %v1078 = vadd.f32 %v837, %v1077
          %v1079 = vpop.f32.mrb[0].mxu0
          %1080 = vmatprep.mubr.bf16.mxu0 %v903
          %1081 = vmatmul.mubr.bf16.gmra.mrb[0].mxu0 %v902
          %v1082 = vpop.f32.mrb[0].mxu0
          %v1083 = vadd.f32 %v838, %v1082
          %v1084 = vpop.f32.mrb[0].mxu0
          %v1085 = vpop.f32.mrb[0].mxu0
          %v1086 = vadd.f32 %v839, %v1085
          %v1087 = vpop.f32.mrb[0].mxu0
          %1088 = vmatprep.mubr.bf16.mxu0 %v905
          %1089 = vmatmul.mubr.bf16.gmra.mrb[0].mxu0 %v904
          %v1090 = vpop.f32.mrb[0].mxu0
          %v1091 = vadd.f32 %v840, %v1090
          %v1092 = vpop.f32.mrb[0].mxu0
          %v1093 = vpop.f32.mrb[0].mxu0
          %v1094 = vadd.f32 %v841, %v1093
          %v1095 = vpop.f32.mrb[0].mxu0
          %1096 = vmatprep.mubr.bf16.mxu0 %v907
          %1097 = vmatmul.mubr.bf16.gmra.mrb[0].mxu0 %v906
          %v1098 = vpop.f32.mrb[0].mxu0
          %v1099 = vadd.f32 %v842, %v1098
          %v1100 = vpop.f32.mrb[0].mxu0
          %v1101 = vpop.f32.mrb[0].mxu0
          %v1102 = vadd.f32 %v843, %v1101
          %v1103 = vpop.f32.mrb[0].mxu0
          %1104 = vmatprep.mubr.bf16.mxu0 %v909
          %1105 = vmatmul.mubr.bf16.gmra.mrb[0].mxu0 %v908
          %v1106 = vpop.f32.mrb[0].mxu0
          %v1107 = vadd.f32 %v844, %v1106
          %v1108 = vpop.f32.mrb[0].mxu0
          %v1109 = vpop.f32.mrb[0].mxu0
          %v1110 = vadd.f32 %v845, %v1109
          %v1111 = vpop.f32.mrb[0].mxu0
          %1112 = vmatprep.mubr.bf16.mxu0 %v911
          %1113 = vmatmul.mubr.bf16.gmra.mrb[0].mxu0 %v910
          %v1114 = vpop.f32.mrb[0].mxu0
          %v1115 = vadd.f32 %v846, %v1114
          %v1116 = vpop.f32.mrb[0].mxu0
          %v1117 = vpop.f32.mrb[0].mxu0
          %v1118 = vadd.f32 %v847, %v1117
          %v1119 = vpop.f32.mrb[0].mxu0
          %1120 = vdwg.mxu0
          %v1121 = vld [vmem:[%s8] sm:$0x1]
          %v1123 = vlaneseq
          %v1124 = vshrl.u32 %v1123, 7
          %v1125 = vsub.s32 0, %v1124
          %v1126 = vrot.slane %v1121, %v1125
          %v1128 = vadd.f32 %v1059, %v1126
          %v1129 = vadd.f32 %v1062, %v1126
          %v1130 = vadd.f32 %v1067, %v1126
          %v1131 = vadd.f32 %v1070, %v1126
          %v1132 = vadd.f32 %v1075, %v1126
          %v1133 = vadd.f32 %v1078, %v1126
          %v1134 = vadd.f32 %v1083, %v1126
          %v1135 = vadd.f32 %v1086, %v1126
          %v1136 = vadd.f32 %v1091, %v1126
          %v1137 = vadd.f32 %v1094, %v1126
          %v1138 = vadd.f32 %v1099, %v1126
          %v1139 = vadd.f32 %v1102, %v1126
          %v1140 = vadd.f32 %v1107, %v1126
          %v1141 = vadd.f32 %v1110, %v1126
          %v1142 = vadd.f32 %v1115, %v1126
          %v1143 = vadd.f32 %v1118, %v1126
          %v1144 = vxor.u32 %v1128, 2147483648
          %v1145 = vxor.u32 %v1129, 2147483648
          %v1146 = vxor.u32 %v1130, 2147483648
          %v1147 = vxor.u32 %v1131, 2147483648
          %v1148 = vxor.u32 %v1132, 2147483648
          %v1149 = vxor.u32 %v1133, 2147483648
          %v1150 = vxor.u32 %v1134, 2147483648
          %v1151 = vxor.u32 %v1135, 2147483648
          %v1152 = vxor.u32 %v1136, 2147483648
          %v1153 = vxor.u32 %v1137, 2147483648
          %v1154 = vxor.u32 %v1138, 2147483648
          %v1155 = vxor.u32 %v1139, 2147483648
          %v1156 = vxor.u32 %v1140, 2147483648
          %v1157 = vxor.u32 %v1141, 2147483648
          %v1158 = vxor.u32 %v1142, 2147483648
          %v1159 = vxor.u32 %v1143, 2147483648
          %v1160 = vmul.f32 %v1144, 1.442695
          %v1161 = vpow.pop %v1160
          %v1162 = vmul.f32 %v1145, 1.442695
          %v1163 = vpow.pop %v1162
          %v1164 = vmul.f32 %v1146, 1.442695
          %v1165 = vpow.pop %v1164
          %v1166 = vmul.f32 %v1147, 1.442695
          %v1167 = vpow.pop %v1166
          %v1168 = vmul.f32 %v1148, 1.442695
          %v1169 = vpow.pop %v1168
          %v1170 = vmul.f32 %v1149, 1.442695
          %v1171 = vpow.pop %v1170
          %v1172 = vmul.f32 %v1150, 1.442695
          %v1173 = vpow.pop %v1172
          %v1174 = vmul.f32 %v1151, 1.442695
          %v1175 = vpow.pop %v1174
          %v1176 = vmul.f32 %v1152, 1.442695
          %v1177 = vpow.pop %v1176
          %v1178 = vmul.f32 %v1153, 1.442695
          %v1179 = vpow.pop %v1178
          %v1180 = vmul.f32 %v1154, 1.442695
          %v1181 = vpow.pop %v1180
          %v1182 = vmul.f32 %v1155, 1.442695
          %v1183 = vpow.pop %v1182
          %v1184 = vmul.f32 %v1156, 1.442695
          %v1185 = vpow.pop %v1184
          %v1186 = vmul.f32 %v1157, 1.442695
          %v1187 = vpow.pop %v1186
          %v1188 = vmul.f32 %v1158, 1.442695
          %v1189 = vpow.pop %v1188
          %v1190 = vmul.f32 %v1159, 1.442695
          %v1191 = vpow.pop %v1190
          %v1192 = vadd.f32 %v1161, 1.0
          %v1193 = vadd.f32 %v1163, 1.0
          %v1194 = vadd.f32 %v1165, 1.0
          %v1195 = vadd.f32 %v1167, 1.0
          %v1196 = vadd.f32 %v1169, 1.0
          %v1197 = vadd.f32 %v1171, 1.0
          %v1198 = vadd.f32 %v1173, 1.0
          %v1199 = vadd.f32 %v1175, 1.0
          %v1200 = vadd.f32 %v1177, 1.0
          %v1201 = vadd.f32 %v1179, 1.0
          %v1202 = vadd.f32 %v1181, 1.0
          %v1203 = vadd.f32 %v1183, 1.0
          %v1204 = vadd.f32 %v1185, 1.0
          %v1205 = vadd.f32 %v1187, 1.0
          %v1206 = vadd.f32 %v1189, 1.0
          %v1207 = vadd.f32 %v1191, 1.0
          %v1208 = vrcp.pop %v1192
          %v1209 = vmul.f32 1.0, %v1208
          %v1210 = vrcp.pop %v1193
          %v1211 = vmul.f32 1.0, %v1210
          %v1212 = vrcp.pop %v1194
          %v1213 = vmul.f32 1.0, %v1212
          %v1214 = vrcp.pop %v1195
          %v1215 = vmul.f32 1.0, %v1214
          %v1216 = vrcp.pop %v1196
          %v1217 = vmul.f32 1.0, %v1216
          %v1218 = vrcp.pop %v1197
          %v1219 = vmul.f32 1.0, %v1218
          %v1220 = vrcp.pop %v1198
          %v1221 = vmul.f32 1.0, %v1220
          %v1222 = vrcp.pop %v1199
          %v1223 = vmul.f32 1.0, %v1222
          %v1224 = vrcp.pop %v1200
          %v1225 = vmul.f32 1.0, %v1224
          %v1226 = vrcp.pop %v1201
          %v1227 = vmul.f32 1.0, %v1226
          %v1228 = vrcp.pop %v1202
          %v1229 = vmul.f32 1.0, %v1228
          %v1230 = vrcp.pop %v1203
          %v1231 = vmul.f32 1.0, %v1230
          %v1232 = vrcp.pop %v1204
          %v1233 = vmul.f32 1.0, %v1232
          %v1234 = vrcp.pop %v1205
          %v1235 = vmul.f32 1.0, %v1234
          %v1236 = vrcp.pop %v1206
          %v1237 = vmul.f32 1.0, %v1236
          %v1238 = vrcp.pop %v1207
          %v1239 = vmul.f32 1.0, %v1238
          %v1240 = vmul.f32 %v1128, %v1209
          %v1241 = vmul.f32 %v1129, %v1211
          %v1242 = vmul.f32 %v1130, %v1213
          %v1243 = vmul.f32 %v1131, %v1215
          %v1244 = vmul.f32 %v1132, %v1217
          %v1245 = vmul.f32 %v1133, %v1219
          %v1246 = vmul.f32 %v1134, %v1221
          %v1247 = vmul.f32 %v1135, %v1223
          %v1248 = vmul.f32 %v1136, %v1225
          %v1249 = vmul.f32 %v1137, %v1227
          %v1250 = vmul.f32 %v1138, %v1229
          %v1251 = vmul.f32 %v1139, %v1231
          %v1252 = vmul.f32 %v1140, %v1233
          %v1253 = vmul.f32 %v1141, %v1235
          %v1254 = vmul.f32 %v1142, %v1237
          %v1255 = vmul.f32 %v1143, %v1239
          %v1256 = vpack.c.bf16 %v1241, %v1240
          %v1257 = vpack.c.bf16 %v1243, %v1242
          %v1258 = vpack.c.bf16 %v1245, %v1244
          %v1259 = vpack.c.bf16 %v1247, %v1246
          %v1260 = vpack.c.bf16 %v1249, %v1248
          %v1261 = vpack.c.bf16 %v1251, %v1250
          %v1262 = vpack.c.bf16 %v1253, %v1252
          %v1263 = vpack.c.bf16 %v1255, %v1254
          %v1264 = vld [vmem:[#allocation11] sm:$0xf]
          %v1265 = vld [vmem:[#allocation11 + $0x4] sm:$0xf]
          %v1266 = vld [vmem:[#allocation11 + $0x8] sm:$0xf]
          %v1267 = vld [vmem:[#allocation11 + $0xc] sm:$0xf]
          %v1268 = vld [vmem:[#allocation11 + $0x10] sm:$0xf]
          %v1269 = vld [vmem:[#allocation11 + $0x14] sm:$0xf]
          %v1270 = vld [vmem:[#allocation11 + $0x18] sm:$0xf]
          %v1271 = vld [vmem:[#allocation11 + $0x1c] sm:$0xf]
          %v1272 = vld [vmem:[#allocation11 + $0x20] sm:$0xf]
          %v1273 = vld [vmem:[#allocation11 + $0x24] sm:$0xf]
          %v1274 = vld [vmem:[#allocation11 + $0x28] sm:$0xf]
          %v1275 = vld [vmem:[#allocation11 + $0x2c] sm:$0xf]
          %v1276 = vld [vmem:[#allocation11 + $0x30] sm:$0xf]
          %v1277 = vld [vmem:[#allocation11 + $0x34] sm:$0xf]
          %v1278 = vld [vmem:[#allocation11 + $0x38] sm:$0xf]
          %v1279 = vld [vmem:[#allocation11 + $0x3c] sm:$0xf]
          %v1280 = vld [vmem:[%s10] sm:$0x1]
          %v1282 = vlaneseq
          %v1283 = vshrl.u32 %v1282, 7
          %v1284 = vsub.s32 0, %v1283
          %v1285 = vrot.slane %v1280, %v1284
          %v1303 = vunpack.c.l.b16 %v1264
          %v1304 = vunpack.c.l.b16 %v1265
          %v1305 = vunpack.c.l.b16 %v1266
          %v1306 = vunpack.c.l.b16 %v1267
          %v1307 = vunpack.c.l.b16 %v1268
          %v1308 = vunpack.c.l.b16 %v1269
          %v1309 = vunpack.c.l.b16 %v1270
          %v1310 = vunpack.c.l.b16 %v1271
          %v1311 = vunpack.c.l.b16 %v1272
          %v1312 = vunpack.c.l.b16 %v1273
          %v1313 = vunpack.c.l.b16 %v1274
          %v1314 = vunpack.c.l.b16 %v1275
          %v1315 = vunpack.c.l.b16 %v1276
          %v1316 = vunpack.c.l.b16 %v1277
          %v1317 = vunpack.c.l.b16 %v1278
          %v1318 = vunpack.c.l.b16 %v1279
          %v1319 = vpack.c.b16 %v1304, %v1303
          %v1320 = vpack.c.b16 %v1306, %v1305
          %v1321 = vpack.c.b16 %v1308, %v1307
          %v1322 = vpack.c.b16 %v1310, %v1309
          %v1323 = vpack.c.b16 %v1312, %v1311
          %v1324 = vpack.c.b16 %v1314, %v1313
          %v1325 = vpack.c.b16 %v1316, %v1315
          %v1326 = vpack.c.b16 %v1318, %v1317
          %1335 = vmatprep.subr.bf16.mxu0 0
          %1336 = vmatpush1.bf16.msra.mxu0 %v1319
          %1337 = vmatprep.subr.bf16.mxu0 0
          %1338 = vmatpush1.bf16.msra.mxu0 %v1320
          %1339 = vmatprep.subr.bf16.mxu0 0
          %1340 = vmatpush1.bf16.msra.mxu0 %v1321
          %1341 = vmatprep.subr.bf16.mxu0 0
          %1342 = vmatpush1.bf16.msra.mxu0 %v1322
          %1343 = vmatprep.subr.bf16.mxu0 0
          %1344 = vmatpush1.bf16.msra.mxu0 %v1323
          %1345 = vmatprep.subr.bf16.mxu0 0
          %1346 = vmatpush1.bf16.msra.mxu0 %v1324
          %1347 = vmatprep.subr.bf16.mxu0 0
          %1348 = vmatpush1.bf16.msra.mxu0 %v1325
          %1349 = vmatprep.subr.bf16.mxu0 0
          %1350 = vmatpush1.bf16.msra.mxu0 %v1326
          %1351 = vmatprep.subr.bf16.mxu0 0
          %1352 = vmatpush1.bf16.msra.mxu0 0
          %1353 = vmatprep.subr.bf16.mxu0 0
          %1354 = vmatpush1.bf16.msra.mxu0 0
          %1355 = vmatprep.subr.bf16.mxu0 0
          %1356 = vmatpush1.bf16.msra.mxu0 0
          %1357 = vmatprep.subr.bf16.mxu0 0
          %1358 = vmatpush1.bf16.msra.mxu0 0
          %1359 = vmatprep.subr.bf16.mxu0 0
          %1360 = vmatpush1.bf16.msra.mxu0 0
          %1361 = vmatprep.subr.bf16.mxu0 0
          %1362 = vmatpush1.bf16.msra.mxu0 0
          %1363 = vmatprep.subr.bf16.mxu0 0
          %1364 = vmatpush1.bf16.msra.mxu0 0
          %1365 = vmatprep.subr.bf16.mxu0 0
          %1366 = vmatpush1.bf16.msra.mxu0 0
          %1367 = vmatprep.mubr.bf16.mxu0 0
          %1368 = vmatmul.mubr.bf16.gmra.mrb[0].mxu0 %v1256
          %v1369 = vpop.f32.mrb[0].mxu0
          %v1370 = vadd.f32 %v1285, %v1369
          %v1371 = vpop.f32.mrb[0].mxu0
          %v1372 = vpop.f32.mrb[0].mxu0
          %v1373 = vadd.f32 %v1285, %v1372
          %v1374 = vpop.f32.mrb[0].mxu0
          %1375 = vmatprep.mubr.bf16.mxu0 0
          %1376 = vmatmul.mubr.bf16.gmra.mrb[0].mxu0 %v1257
          %v1377 = vpop.f32.mrb[0].mxu0
          %v1378 = vadd.f32 %v1285, %v1377
          %v1379 = vpop.f32.mrb[0].mxu0
          %v1380 = vpop.f32.mrb[0].mxu0
          %v1381 = vadd.f32 %v1285, %v1380
          %v1382 = vpop.f32.mrb[0].mxu0
          %1383 = vmatprep.mubr.bf16.mxu0 0
          %1384 = vmatmul.mubr.bf16.gmra.mrb[0].mxu0 %v1258
          %v1385 = vpop.f32.mrb[0].mxu0
          %v1386 = vadd.f32 %v1285, %v1385
          %v1387 = vpop.f32.mrb[0].mxu0
          %v1388 = vpop.f32.mrb[0].mxu0
          %v1389 = vadd.f32 %v1285, %v1388
          %v1390 = vpop.f32.mrb[0].mxu0
          %1391 = vmatprep.mubr.bf16.mxu0 0
          %1392 = vmatmul.mubr.bf16.gmra.mrb[0].mxu0 %v1259
          %v1393 = vpop.f32.mrb[0].mxu0
          %v1394 = vadd.f32 %v1285, %v1393
          %v1395 = vpop.f32.mrb[0].mxu0
          %v1396 = vpop.f32.mrb[0].mxu0
          %v1397 = vadd.f32 %v1285, %v1396
          %v1398 = vpop.f32.mrb[0].mxu0
          %1399 = vmatprep.mubr.bf16.mxu0 0
          %1400 = vmatmul.mubr.bf16.gmra.mrb[0].mxu0 %v1260
          %v1401 = vpop.f32.mrb[0].mxu0
          %v1402 = vadd.f32 %v1285, %v1401
          %v1403 = vpop.f32.mrb[0].mxu0
          %v1404 = vpop.f32.mrb[0].mxu0
          %v1405 = vadd.f32 %v1285, %v1404
          %v1406 = vpop.f32.mrb[0].mxu0
          %1407 = vmatprep.mubr.bf16.mxu0 0
          %1408 = vmatmul.mubr.bf16.gmra.mrb[0].mxu0 %v1261
          %v1409 = vpop.f32.mrb[0].mxu0
          %v1410 = vadd.f32 %v1285, %v1409
          %v1411 = vpop.f32.mrb[0].mxu0
          %v1412 = vpop.f32.mrb[0].mxu0
          %v1413 = vadd.f32 %v1285, %v1412
          %v1414 = vpop.f32.mrb[0].mxu0
          %1415 = vmatprep.mubr.bf16.mxu0 0
          %1416 = vmatmul.mubr.bf16.gmra.mrb[0].mxu0 %v1262
          %v1417 = vpop.f32.mrb[0].mxu0
          %v1418 = vadd.f32 %v1285, %v1417
          %v1419 = vpop.f32.mrb[0].mxu0
          %v1420 = vpop.f32.mrb[0].mxu0
          %v1421 = vadd.f32 %v1285, %v1420
          %v1422 = vpop.f32.mrb[0].mxu0
          %1423 = vmatprep.mubr.bf16.mxu0 0
          %1424 = vmatmul.mubr.bf16.gmra.mrb[0].mxu0 %v1263
          %v1425 = vpop.f32.mrb[0].mxu0
          %v1426 = vadd.f32 %v1285, %v1425
          %v1427 = vpop.f32.mrb[0].mxu0
          %v1428 = vpop.f32.mrb[0].mxu0
          %v1429 = vadd.f32 %v1285, %v1428
          %v1430 = vpop.f32.mrb[0].mxu0
          %1431 = vdwg.mxu0
          %v1432 = vxor.u32 %v1370, 2147483648
          %v1433 = vxor.u32 %v1373, 2147483648
          %v1434 = vxor.u32 %v1378, 2147483648
          %v1435 = vxor.u32 %v1381, 2147483648
          %v1436 = vxor.u32 %v1386, 2147483648
          %v1437 = vxor.u32 %v1389, 2147483648
          %v1438 = vxor.u32 %v1394, 2147483648
          %v1439 = vxor.u32 %v1397, 2147483648
          %v1440 = vxor.u32 %v1402, 2147483648
          %v1441 = vxor.u32 %v1405, 2147483648
          %v1442 = vxor.u32 %v1410, 2147483648
          %v1443 = vxor.u32 %v1413, 2147483648
          %v1444 = vxor.u32 %v1418, 2147483648
          %v1445 = vxor.u32 %v1421, 2147483648
          %v1446 = vxor.u32 %v1426, 2147483648
          %v1447 = vxor.u32 %v1429, 2147483648
          %v1448 = vmul.f32 %v1432, 1.442695
          %v1449 = vpow.pop %v1448
          %v1450 = vmul.f32 %v1433, 1.442695
          %v1451 = vpow.pop %v1450
          %v1452 = vmul.f32 %v1434, 1.442695
          %v1453 = vpow.pop %v1452
          %v1454 = vmul.f32 %v1435, 1.442695
          %v1455 = vpow.pop %v1454
          %v1456 = vmul.f32 %v1436, 1.442695
          %v1457 = vpow.pop %v1456
          %v1458 = vmul.f32 %v1437, 1.442695
          %v1459 = vpow.pop %v1458
          %v1460 = vmul.f32 %v1438, 1.442695
          %v1461 = vpow.pop %v1460
          %v1462 = vmul.f32 %v1439, 1.442695
          %v1463 = vpow.pop %v1462
          %v1464 = vmul.f32 %v1440, 1.442695
          %v1465 = vpow.pop %v1464
          %v1466 = vmul.f32 %v1441, 1.442695
          %v1467 = vpow.pop %v1466
          %v1468 = vmul.f32 %v1442, 1.442695
          %v1469 = vpow.pop %v1468
          %v1470 = vmul.f32 %v1443, 1.442695
          %v1471 = vpow.pop %v1470
          %v1472 = vmul.f32 %v1444, 1.442695
          %v1473 = vpow.pop %v1472
          %v1474 = vmul.f32 %v1445, 1.442695
          %v1475 = vpow.pop %v1474
          %v1476 = vmul.f32 %v1446, 1.442695
          %v1477 = vpow.pop %v1476
          %v1478 = vmul.f32 %v1447, 1.442695
          %v1479 = vpow.pop %v1478
          %v1480 = vadd.f32 %v1449, 1.0
          %v1481 = vadd.f32 %v1451, 1.0
          %v1482 = vadd.f32 %v1453, 1.0
          %v1483 = vadd.f32 %v1455, 1.0
          %v1484 = vadd.f32 %v1457, 1.0
          %v1485 = vadd.f32 %v1459, 1.0
          %v1486 = vadd.f32 %v1461, 1.0
          %v1487 = vadd.f32 %v1463, 1.0
          %v1488 = vadd.f32 %v1465, 1.0
          %v1489 = vadd.f32 %v1467, 1.0
          %v1490 = vadd.f32 %v1469, 1.0
          %v1491 = vadd.f32 %v1471, 1.0
          %v1492 = vadd.f32 %v1473, 1.0
          %v1493 = vadd.f32 %v1475, 1.0
          %v1494 = vadd.f32 %v1477, 1.0
          %v1495 = vadd.f32 %v1479, 1.0
          %v1496 = vrcp.pop %v1480
          %v1497 = vmul.f32 1.0, %v1496
          %v1498 = vrcp.pop %v1481
          %v1499 = vmul.f32 1.0, %v1498
          %v1500 = vrcp.pop %v1482
          %v1501 = vmul.f32 1.0, %v1500
          %v1502 = vrcp.pop %v1483
          %v1503 = vmul.f32 1.0, %v1502
          %v1504 = vrcp.pop %v1484
          %v1505 = vmul.f32 1.0, %v1504
          %v1506 = vrcp.pop %v1485
          %v1507 = vmul.f32 1.0, %v1506
          %v1508 = vrcp.pop %v1486
          %v1509 = vmul.f32 1.0, %v1508
          %v1510 = vrcp.pop %v1487
          %v1511 = vmul.f32 1.0, %v1510
          %v1512 = vrcp.pop %v1488
          %v1513 = vmul.f32 1.0, %v1512
          %v1514 = vrcp.pop %v1489
          %v1515 = vmul.f32 1.0, %v1514
          %v1516 = vrcp.pop %v1490
          %v1517 = vmul.f32 1.0, %v1516
          %v1518 = vrcp.pop %v1491
          %v1519 = vmul.f32 1.0, %v1518
          %v1520 = vrcp.pop %v1492
          %v1521 = vmul.f32 1.0, %v1520
          %v1522 = vrcp.pop %v1493
          %v1523 = vmul.f32 1.0, %v1522
          %v1524 = vrcp.pop %v1494
          %v1525 = vmul.f32 1.0, %v1524
          %v1526 = vrcp.pop %v1495
          %v1527 = vmul.f32 1.0, %v1526
          %v1528 = vmul.f32 %v1370, %v1497
          %v1529 = vmul.f32 %v1373, %v1499
          %v1530 = vmul.f32 %v1378, %v1501
          %v1531 = vmul.f32 %v1381, %v1503
          %v1532 = vmul.f32 %v1386, %v1505
          %v1533 = vmul.f32 %v1389, %v1507
          %v1534 = vmul.f32 %v1394, %v1509
          %v1535 = vmul.f32 %v1397, %v1511
          %v1536 = vmul.f32 %v1402, %v1513
          %v1537 = vmul.f32 %v1405, %v1515
          %v1538 = vmul.f32 %v1410, %v1517
          %v1539 = vmul.f32 %v1413, %v1519
          %v1540 = vmul.f32 %v1418, %v1521
          %v1541 = vmul.f32 %v1421, %v1523
          %v1542 = vmul.f32 %v1426, %v1525
          %v1543 = vmul.f32 %v1429, %v1527
          %v1544 = vld [vmem:[%s661] sm:$0x1]
          %s1545 = smul.u32 %s48, 32
          %v1546 = vstv %s1545
          %v1547 = vsub.s32 %v1544, %v1546
          %v1548 = vlaneseq
          %v1549 = vshrl.u32 %v1548, 7
          %v1550 = vadd.s32 %v1549, 8
          %v1551 = vadd.s32 %v1549, 16
          %v1552 = vadd.s32 %v1549, 24
          %v1553 = vlaneseq
          %v1554 = vshrl.u32 %v1553, 7
          %v1555 = vsub.s32 0, %v1554
          %v1556 = vrot.slane %v1547, %v1555
          %vm1557 = vcmp.eq.s32.totalorder %v1549, %v1556
          %vm1558 = vcmp.eq.s32.totalorder %v1550, %v1556
          %vm1559 = vcmp.eq.s32.totalorder %v1551, %v1556
          %vm1560 = vcmp.eq.s32.totalorder %v1552, %v1556
          %v1561 = vsel %vm1557, 1.0, 0.0
          %v1562 = vsel %vm1558, 1.0, 0.0
          %v1563 = vsel %vm1559, 1.0, 0.0
          %v1564 = vsel %vm1560, 1.0, 0.0
          %v1565 = vpack.c.bf16 %v1562, %v1561
          %v1566 = vpack.c.bf16 %v1564, %v1563
          %v1567 = vld [vmem:[#allocation2] sm:$0xff]
          %v1568 = vld [vmem:[#allocation2 + $0x8] sm:$0xff]
          %v1569 = vld [vmem:[#allocation2 + $0x10] sm:$0xff]
          %v1570 = vld [vmem:[#allocation2 + $0x18] sm:$0xff]
          %v1571 = vpack.c.bf16 %v1529, %v1528
          %v1572 = vpack.c.bf16 %v1531, %v1530
          %v1573 = vpack.c.bf16 %v1533, %v1532
          %v1574 = vpack.c.bf16 %v1535, %v1534
          %v1575 = vpack.c.bf16 %v1537, %v1536
          %v1576 = vpack.c.bf16 %v1539, %v1538
          %v1577 = vpack.c.bf16 %v1541, %v1540
          %v1578 = vpack.c.bf16 %v1543, %v1542
          %1579 = vmatprep.subr.bf16.mxu0 0
          %1580 = vmatpush1.bf16.msra.mxu0 %v1571
          %1581 = vmatprep.subr.bf16.mxu0 0
          %1582 = vmatpush1.bf16.msra.mxu0 %v1572
          %1583 = vmatprep.subr.bf16.mxu0 0
          %1584 = vmatpush1.bf16.msra.mxu0 %v1573
          %1585 = vmatprep.subr.bf16.mxu0 0
          %1586 = vmatpush1.bf16.msra.mxu0 %v1574
          %1587 = vmatprep.subr.bf16.mxu0 0
          %1588 = vmatpush1.bf16.msra.mxu0 %v1575
          %1589 = vmatprep.subr.bf16.mxu0 0
          %1590 = vmatpush1.bf16.msra.mxu0 %v1576
          %1591 = vmatprep.subr.bf16.mxu0 0
          %1592 = vmatpush1.bf16.msra.mxu0 %v1577
          %1593 = vmatprep.subr.bf16.mxu0 0
          %1594 = vmatpush1.bf16.msra.mxu0 %v1578
          %1595 = vmatprep.subr.bf16.mxu0 0
          %1596 = vmatpush1.bf16.msra.mxu0 0
          %1597 = vmatprep.subr.bf16.mxu0 0
          %1598 = vmatpush1.bf16.msra.mxu0 0
          %1599 = vmatprep.subr.bf16.mxu0 0
          %1600 = vmatpush1.bf16.msra.mxu0 0
          %1601 = vmatprep.subr.bf16.mxu0 0
          %1602 = vmatpush1.bf16.msra.mxu0 0
          %1603 = vmatprep.subr.bf16.mxu0 0
          %1604 = vmatpush1.bf16.msra.mxu0 0
          %1605 = vmatprep.subr.bf16.mxu0 0
          %1606 = vmatpush1.bf16.msra.mxu0 0
          %1607 = vmatprep.subr.bf16.mxu0 0
          %1608 = vmatpush1.bf16.msra.mxu0 0
          %1609 = vmatprep.subr.bf16.mxu0 0
          %1610 = vmatpush1.bf16.msra.mxu0 0
          %1611 = vmatprep.mubr.bf16.mxu0 0
          %1612 = vmatmul.mubr.bf16.gmra.mrb[0].mxu0 %v1565
          %v1613 = vpop.f32.mrb[0].mxu0
          %v1614 = vadd.f32 0.0, %v1613
          %v1615 = vpop.f32.mrb[0].mxu0
          %v1616 = vpop.f32.mrb[0].mxu0
          %v1617 = vadd.f32 0.0, %v1616
          %v1618 = vpop.f32.mrb[0].mxu0
          %1619 = vmatprep.mubr.bf16.mxu0 0
          %1620 = vmatmul.mubr.bf16.gmra.mrb[0].mxu0 %v1566
          %v1621 = vpop.f32.mrb[0].mxu0
          %v1622 = vadd.f32 0.0, %v1621
          %v1623 = vpop.f32.mrb[0].mxu0
          %v1624 = vpop.f32.mrb[0].mxu0
          %v1625 = vadd.f32 0.0, %v1624
          %v1626 = vpop.f32.mrb[0].mxu0
          %1627 = vdwg.mxu0
          %v1628 = vadd.f32 %v1567, %v1614
          %v1629 = vadd.f32 %v1568, %v1617
          %v1630 = vadd.f32 %v1569, %v1622
          %v1631 = vadd.f32 %v1570, %v1625
          %1632 = vst [vmem:[#allocation2] sm:$0xff] %v1628
          %1633 = vst [vmem:[#allocation2 + $0x8] sm:$0xff] %v1629
          %1634 = vst [vmem:[#allocation2 + $0x10] sm:$0xff] %v1630
          %1635 = vst [vmem:[#allocation2 + $0x18] sm:$0xff] %v1631
        $region100: #{tpu_custom_call.1} parent=71 // pred_fallthru
          _
        %p1636 = scmp.eq.s32.totalorder %s49, 2
        // Predicated region
        $region101: #{tpu_custom_call.1} parent=71 // pred_check
          %p1637 = pneg %p1636
        $region102: #{tpu_custom_call.1} parent=71 // pred_check_branch
          %1639 = sbr.rel (%p1637) target = $region104
        $region103: #{tpu_custom_call.1} parent=71 // pred_region
          %v1640 = vld [vmem:[%s549] sm:$0xf]
          %v1641 = vld [vmem:[%s549 + $0x4] sm:$0xf]
          %v1642 = vld [vmem:[%s549 + $0x8] sm:$0xf]
          %v1643 = vld [vmem:[%s549 + $0xc] sm:$0xf]
          %v1644 = vld [vmem:[#allocation2] sm:$0xff]
          %v1645 = vld [vmem:[#allocation2 + $0x8] sm:$0xff]
          %v1646 = vld [vmem:[#allocation2 + $0x10] sm:$0xff]
          %v1647 = vld [vmem:[#allocation2 + $0x18] sm:$0xff]
          %v1648 = vpack.c.bf16 %v1645, %v1644
          %v1649 = vpack.c.bf16 %v1647, %v1646
          %v1654 = vunpack.c.l.b16 %v1640
          %v1655 = vunpack.c.l.b16 %v1641
          %v1656 = vunpack.c.l.b16 %v1642
          %v1657 = vunpack.c.l.b16 %v1643
          %v1658 = vpack.c.b16 %v1655, %v1654
          %v1659 = vpack.c.b16 %v1657, %v1656
          %v1662 = vld [vmem:[#allocation12] sm:$0xf]
          %v1663 = vld [vmem:[#allocation12 + $0x4] sm:$0xf]
          %v1664 = vld [vmem:[#allocation12 + $0x8] sm:$0xf]
          %v1665 = vld [vmem:[#allocation12 + $0xc] sm:$0xf]
          %v1666 = vld [vmem:[#allocation12 + $0x10] sm:$0xf]
          %v1667 = vld [vmem:[#allocation12 + $0x14] sm:$0xf]
          %v1668 = vld [vmem:[#allocation12 + $0x18] sm:$0xf]
          %v1669 = vld [vmem:[#allocation12 + $0x1c] sm:$0xf]
          %v1670 = vld [vmem:[#allocation12 + $0x20] sm:$0xf]
          %v1671 = vld [vmem:[#allocation12 + $0x24] sm:$0xf]
          %v1672 = vld [vmem:[#allocation12 + $0x28] sm:$0xf]
          %v1673 = vld [vmem:[#allocation12 + $0x2c] sm:$0xf]
          %v1674 = vld [vmem:[#allocation12 + $0x30] sm:$0xf]
          %v1675 = vld [vmem:[#allocation12 + $0x34] sm:$0xf]
          %v1676 = vld [vmem:[#allocation12 + $0x38] sm:$0xf]
          %v1677 = vld [vmem:[#allocation12 + $0x3c] sm:$0xf]
          %v1678 = vld [vmem:[#allocation12 + $0x40] sm:$0xf]
          %v1679 = vld [vmem:[#allocation12 + $0x44] sm:$0xf]
          %v1680 = vld [vmem:[#allocation12 + $0x48] sm:$0xf]
          %v1681 = vld [vmem:[#allocation12 + $0x4c] sm:$0xf]
          %v1682 = vld [vmem:[#allocation12 + $0x50] sm:$0xf]
          %v1683 = vld [vmem:[#allocation12 + $0x54] sm:$0xf]
          %v1684 = vld [vmem:[#allocation12 + $0x58] sm:$0xf]
          %v1685 = vld [vmem:[#allocation12 + $0x5c] sm:$0xf]
          %v1686 = vld [vmem:[#allocation12 + $0x60] sm:$0xf]
          %v1687 = vld [vmem:[#allocation12 + $0x64] sm:$0xf]
          %v1688 = vld [vmem:[#allocation12 + $0x68] sm:$0xf]
          %v1689 = vld [vmem:[#allocation12 + $0x6c] sm:$0xf]
          %v1690 = vld [vmem:[#allocation12 + $0x70] sm:$0xf]
          %v1691 = vld [vmem:[#allocation12 + $0x74] sm:$0xf]
          %v1692 = vld [vmem:[#allocation12 + $0x78] sm:$0xf]
          %v1693 = vld [vmem:[#allocation12 + $0x7c] sm:$0xf]
          %v1694 = vld [vmem:[%s12] sm:$0x1]
          %v1696 = vlaneseq
          %v1697 = vshrl.u32 %v1696, 7
          %v1698 = vsub.s32 0, %v1697
          %v1699 = vrot.slane %v1694, %v1698
          %v1733 = vunpack.c.l.b16 %v1662
          %v1734 = vunpack.c.l.b16 %v1663
          %v1735 = vunpack.c.l.b16 %v1664
          %v1736 = vunpack.c.l.b16 %v1665
          %v1737 = vunpack.c.l.b16 %v1666
          %v1738 = vunpack.c.l.b16 %v1667
          %v1739 = vunpack.c.l.b16 %v1668
          %v1740 = vunpack.c.l.b16 %v1669
          %v1741 = vunpack.c.l.b16 %v1670
          %v1742 = vunpack.c.l.b16 %v1671
          %v1743 = vunpack.c.l.b16 %v1672
          %v1744 = vunpack.c.l.b16 %v1673
          %v1745 = vunpack.c.l.b16 %v1674
          %v1746 = vunpack.c.l.b16 %v1675
          %v1747 = vunpack.c.l.b16 %v1676
          %v1748 = vunpack.c.l.b16 %v1677
          %v1749 = vunpack.c.l.b16 %v1678
          %v1750 = vunpack.c.l.b16 %v1679
          %v1751 = vunpack.c.l.b16 %v1680
          %v1752 = vunpack.c.l.b16 %v1681
          %v1753 = vunpack.c.l.b16 %v1682
          %v1754 = vunpack.c.l.b16 %v1683
          %v1755 = vunpack.c.l.b16 %v1684
          %v1756 = vunpack.c.l.b16 %v1685
          %v1757 = vunpack.c.l.b16 %v1686
          %v1758 = vunpack.c.l.b16 %v1687
          %v1759 = vunpack.c.l.b16 %v1688
          %v1760 = vunpack.c.l.b16 %v1689
          %v1761 = vunpack.c.l.b16 %v1690
          %v1762 = vunpack.c.l.b16 %v1691
          %v1763 = vunpack.c.l.b16 %v1692
          %v1764 = vunpack.c.l.b16 %v1693
          %v1765 = vpack.c.b16 %v1734, %v1733
          %v1766 = vpack.c.b16 %v1736, %v1735
          %v1767 = vpack.c.b16 %v1738, %v1737
          %v1768 = vpack.c.b16 %v1740, %v1739
          %v1769 = vpack.c.b16 %v1742, %v1741
          %v1770 = vpack.c.b16 %v1744, %v1743
          %v1771 = vpack.c.b16 %v1746, %v1745
          %v1772 = vpack.c.b16 %v1748, %v1747
          %v1773 = vpack.c.b16 %v1750, %v1749
          %v1774 = vpack.c.b16 %v1752, %v1751
          %v1775 = vpack.c.b16 %v1754, %v1753
          %v1776 = vpack.c.b16 %v1756, %v1755
          %v1777 = vpack.c.b16 %v1758, %v1757
          %v1778 = vpack.c.b16 %v1760, %v1759
          %v1779 = vpack.c.b16 %v1762, %v1761
          %v1780 = vpack.c.b16 %v1764, %v1763
          %1797 = vmatprep.subr.bf16.mxu0 0
          %1798 = vmatpush1.bf16.msra.mxu0 %v1765
          %1799 = vmatprep.subr.bf16.mxu0 0
          %1800 = vmatpush1.bf16.msra.mxu0 %v1766
          %1801 = vmatprep.subr.bf16.mxu0 0
          %1802 = vmatpush1.bf16.msra.mxu0 %v1767
          %1803 = vmatprep.subr.bf16.mxu0 0
          %1804 = vmatpush1.bf16.msra.mxu0 %v1768
          %1805 = vmatprep.subr.bf16.mxu0 0
          %1806 = vmatpush1.bf16.msra.mxu0 %v1769
          %1807 = vmatprep.subr.bf16.mxu0 0
          %1808 = vmatpush1.bf16.msra.mxu0 %v1770
          %1809 = vmatprep.subr.bf16.mxu0 0
          %1810 = vmatpush1.bf16.msra.mxu0 %v1771
          %1811 = vmatprep.subr.bf16.mxu0 0
          %1812 = vmatpush1.bf16.msra.mxu0 %v1772
          %1813 = vmatprep.subr.bf16.mxu0 0
          %1814 = vmatpush1.bf16.msra.mxu0 %v1773
          %1815 = vmatprep.subr.bf16.mxu0 0
          %1816 = vmatpush1.bf16.msra.mxu0 %v1774
          %1817 = vmatprep.subr.bf16.mxu0 0
          %1818 = vmatpush1.bf16.msra.mxu0 %v1775
          %1819 = vmatprep.subr.bf16.mxu0 0
          %1820 = vmatpush1.bf16.msra.mxu0 %v1776
          %1821 = vmatprep.subr.bf16.mxu0 0
          %1822 = vmatpush1.bf16.msra.mxu0 %v1777
          %1823 = vmatprep.subr.bf16.mxu0 0
          %1824 = vmatpush1.bf16.msra.mxu0 %v1778
          %1825 = vmatprep.subr.bf16.mxu0 0
          %1826 = vmatpush1.bf16.msra.mxu0 %v1779
          %1827 = vmatprep.subr.bf16.mxu0 0
          %1828 = vmatpush1.bf16.msra.mxu0 %v1780
          %1829 = vmatprep.mubr.bf16.mxu0 %v1648
          %1830 = vmatmul.mubr.bf16.gmra.mrb[0].mxu0 %v1658
          %v1831 = vpop.f32.mrb[0].mxu0
          %v1832 = vadd.f32 %v1699, %v1831
          %v1833 = vpop.f32.mrb[0].mxu0
          %v1834 = vpop.f32.mrb[0].mxu0
          %v1835 = vadd.f32 %v1699, %v1834
          %v1836 = vpop.f32.mrb[0].mxu0
          %1837 = vmatprep.mubr.bf16.mxu0 %v1649
          %1838 = vmatmul.mubr.bf16.gmra.mrb[0].mxu0 %v1659
          %v1839 = vpop.f32.mrb[0].mxu0
          %v1840 = vadd.f32 %v1699, %v1839
          %v1841 = vpop.f32.mrb[0].mxu0
          %v1842 = vpop.f32.mrb[0].mxu0
          %v1843 = vadd.f32 %v1699, %v1842
          %v1844 = vpop.f32.mrb[0].mxu0
          %1845 = vdwg.mxu0
          %v1846 = vxor.u32 %v1832, 2147483648
          %v1847 = vxor.u32 %v1835, 2147483648
          %v1848 = vxor.u32 %v1840, 2147483648
          %v1849 = vxor.u32 %v1843, 2147483648
          %v1850 = vmul.f32 %v1846, 1.442695
          %v1851 = vpow.pop %v1850
          %v1852 = vmul.f32 %v1847, 1.442695
          %v1853 = vpow.pop %v1852
          %v1854 = vmul.f32 %v1848, 1.442695
          %v1855 = vpow.pop %v1854
          %v1856 = vmul.f32 %v1849, 1.442695
          %v1857 = vpow.pop %v1856
          %v1858 = vadd.f32 %v1851, 1.0
          %v1859 = vadd.f32 %v1853, 1.0
          %v1860 = vadd.f32 %v1855, 1.0
          %v1861 = vadd.f32 %v1857, 1.0
          %v1862 = vrcp.pop %v1858
          %v1863 = vmul.f32 1.0, %v1862
          %v1864 = vrcp.pop %v1859
          %v1865 = vmul.f32 1.0, %v1864
          %v1866 = vrcp.pop %v1860
          %v1867 = vmul.f32 1.0, %v1866
          %v1868 = vrcp.pop %v1861
          %v1869 = vmul.f32 1.0, %v1868
          %v1870 = vmul.f32 %v1832, %v1863
          %v1871 = vmul.f32 %v1835, %v1865
          %v1872 = vmul.f32 %v1840, %v1867
          %v1873 = vmul.f32 %v1843, %v1869
          %v1874 = vpack.c.bf16 %v1871, %v1870
          %v1875 = vpack.c.bf16 %v1873, %v1872
          %v1876 = vld [vmem:[#allocation14] sm:$0xf]
          %v1877 = vld [vmem:[#allocation14 + $0x4] sm:$0xf]
          %v1878 = vld [vmem:[#allocation14 + $0x8] sm:$0xf]
          %v1879 = vld [vmem:[#allocation14 + $0xc] sm:$0xf]
          %v1880 = vld [vmem:[#allocation14 + $0x10] sm:$0xf]
          %v1881 = vld [vmem:[#allocation14 + $0x14] sm:$0xf]
          %v1882 = vld [vmem:[#allocation14 + $0x18] sm:$0xf]
          %v1883 = vld [vmem:[#allocation14 + $0x1c] sm:$0xf]
          %v1884 = vld [vmem:[#allocation14 + $0x20] sm:$0xf]
          %v1885 = vld [vmem:[#allocation14 + $0x24] sm:$0xf]
          %v1886 = vld [vmem:[#allocation14 + $0x28] sm:$0xf]
          %v1887 = vld [vmem:[#allocation14 + $0x2c] sm:$0xf]
          %v1888 = vld [vmem:[#allocation14 + $0x30] sm:$0xf]
          %v1889 = vld [vmem:[#allocation14 + $0x34] sm:$0xf]
          %v1890 = vld [vmem:[#allocation14 + $0x38] sm:$0xf]
          %v1891 = vld [vmem:[#allocation14 + $0x3c] sm:$0xf]
          %v1892 = vld [vmem:[%s14] sm:$0x1]
          %v1894 = vlaneseq
          %v1895 = vshrl.u32 %v1894, 7
          %v1896 = vsub.s32 0, %v1895
          %v1897 = vrot.slane %v1892, %v1896
          %v1915 = vunpack.c.l.b16 %v1876
          %v1916 = vunpack.c.l.b16 %v1877
          %v1917 = vunpack.c.l.b16 %v1878
          %v1918 = vunpack.c.l.b16 %v1879
          %v1919 = vunpack.c.l.b16 %v1880
          %v1920 = vunpack.c.l.b16 %v1881
          %v1921 = vunpack.c.l.b16 %v1882
          %v1922 = vunpack.c.l.b16 %v1883
          %v1923 = vunpack.c.l.b16 %v1884
          %v1924 = vunpack.c.l.b16 %v1885
          %v1925 = vunpack.c.l.b16 %v1886
          %v1926 = vunpack.c.l.b16 %v1887
          %v1927 = vunpack.c.l.b16 %v1888
          %v1928 = vunpack.c.l.b16 %v1889
          %v1929 = vunpack.c.l.b16 %v1890
          %v1930 = vunpack.c.l.b16 %v1891
          %v1931 = vpack.c.b16 %v1916, %v1915
          %v1932 = vpack.c.b16 %v1918, %v1917
          %v1933 = vpack.c.b16 %v1920, %v1919
          %v1934 = vpack.c.b16 %v1922, %v1921
          %v1935 = vpack.c.b16 %v1924, %v1923
          %v1936 = vpack.c.b16 %v1926, %v1925
          %v1937 = vpack.c.b16 %v1928, %v1927
          %v1938 = vpack.c.b16 %v1930, %v1929
          %1947 = vmatprep.subr.bf16.mxu0 0
          %1948 = vmatpush1.bf16.msra.mxu0 %v1931
          %1949 = vmatprep.subr.bf16.mxu0 0
          %1950 = vmatpush1.bf16.msra.mxu0 %v1932
          %1951 = vmatprep.subr.bf16.mxu0 0
          %1952 = vmatpush1.bf16.msra.mxu0 %v1933
          %1953 = vmatprep.subr.bf16.mxu0 0
          %1954 = vmatpush1.bf16.msra.mxu0 %v1934
          %1955 = vmatprep.subr.bf16.mxu0 0
          %1956 = vmatpush1.bf16.msra.mxu0 %v1935
          %1957 = vmatprep.subr.bf16.mxu0 0
          %1958 = vmatpush1.bf16.msra.mxu0 %v1936
          %1959 = vmatprep.subr.bf16.mxu0 0
          %1960 = vmatpush1.bf16.msra.mxu0 %v1937
          %1961 = vmatprep.subr.bf16.mxu0 0
          %1962 = vmatpush1.bf16.msra.mxu0 %v1938
          %1963 = vmatprep.subr.bf16.mxu0 0
          %1964 = vmatpush1.bf16.msra.mxu0 0
          %1965 = vmatprep.subr.bf16.mxu0 0
          %1966 = vmatpush1.bf16.msra.mxu0 0
          %1967 = vmatprep.subr.bf16.mxu0 0
          %1968 = vmatpush1.bf16.msra.mxu0 0
          %1969 = vmatprep.subr.bf16.mxu0 0
          %1970 = vmatpush1.bf16.msra.mxu0 0
          %1971 = vmatprep.subr.bf16.mxu0 0
          %1972 = vmatpush1.bf16.msra.mxu0 0
          %1973 = vmatprep.subr.bf16.mxu0 0
          %1974 = vmatpush1.bf16.msra.mxu0 0
          %1975 = vmatprep.subr.bf16.mxu0 0
          %1976 = vmatpush1.bf16.msra.mxu0 0
          %1977 = vmatprep.subr.bf16.mxu0 0
          %1978 = vmatpush1.bf16.msra.mxu0 0
          %1979 = vmatprep.mubr.bf16.mxu0 0
          %1980 = vmatmul.mubr.bf16.gmra.mrb[0].mxu0 %v1874
          %v1981 = vpop.f32.mrb[0].mxu0
          %v1982 = vadd.f32 %v1897, %v1981
          %v1983 = vpop.f32.mrb[0].mxu0
          %v1984 = vpop.f32.mrb[0].mxu0
          %v1985 = vadd.f32 %v1897, %v1984
          %v1986 = vpop.f32.mrb[0].mxu0
          %1987 = vmatprep.mubr.bf16.mxu0 0
          %1988 = vmatmul.mubr.bf16.gmra.mrb[0].mxu0 %v1875
          %v1989 = vpop.f32.mrb[0].mxu0
          %v1990 = vadd.f32 %v1897, %v1989
          %v1991 = vpop.f32.mrb[0].mxu0
          %v1992 = vpop.f32.mrb[0].mxu0
          %v1993 = vadd.f32 %v1897, %v1992
          %v1994 = vpop.f32.mrb[0].mxu0
          %1995 = vdwg.mxu0
          %1996 = vst [vmem:[%s630] sm:$0xff] %v1982
          %1997 = vst [vmem:[%s630 + $0x8] sm:$0xff] %v1985
          %1998 = vst [vmem:[%s630 + $0x10] sm:$0xff] %v1990
          %1999 = vst [vmem:[%s630 + $0x18] sm:$0xff] %v1993
        $region104: #{tpu_custom_call.1} parent=71 // pred_fallthru
          _
        %s2000 = sand.u32 %s375, 1
        %s2001 = scalar_lea.sflag [#allocation8], %s2000
        %s2002 = sand.u32 %s375, 1
        %s2003 = smul.addr %s2002, 32
        %s2004 = scalar_lea.vmem [#allocation15], %s2003
        // Predicated region
        $region105: #{tpu_custom_call.1} parent=71 // pred_check
          %p2005 = pneg %p385
        $region106: #{tpu_custom_call.1} parent=71 // pred_check_branch
          %2007 = sbr.rel (%p2005) target = $region108
        $region107: #{tpu_custom_call.1} parent=71 // pred_region
          %s2008 = smul.u32 4, %s48
          %s2010 = ssub.s32 512, 512
          %2011 = vsyncadd %s2001, %s2010
          %s2012 = smul.addr %s2008, 128
          %s2013 = scalar_lea.hbm %s15, %s2012
          %s2014 = sshll.u32 %s2004, 4
          %s2015 = int_to_ptr.vmem [resolvable:$true] %s2014
          %2020 = dma.vmem_to_hbm [thread:$0]  %s2015, 512, %s2013, %s2001, 128, 128, 8
        $region108: #{tpu_custom_call.1} parent=71 // pred_fallthru
          _
      $region72: #{tpu_custom_call.1} parent=5 // pred_fallthru
        _
      %p2021 = scmp.le.s32.totalorder 2, %s39
      // Predicated region
      $region109: #{tpu_custom_call.1} parent=5 // pred_check
        %p2022 = pneg %p2021
      $region110: #{tpu_custom_call.1} parent=5 // pred_check_branch
        %2024 = sbr.rel (%p2022) target = $region112
      $region111: #{tpu_custom_call.1} parent=5 // pred_region
        %s2025 = ssub.s32 %s39, 2
        // Predicated region
        $region113: #{tpu_custom_call.1} parent=111 // pred_check
          %p2026 = pneg %p391
        $region114: #{tpu_custom_call.1} parent=111 // pred_check_branch
          %2028 = sbr.rel (%p2026) target = $region116
        $region115: #{tpu_custom_call.1} parent=111 // pred_region
          %s2029 = sand.u32 %s376, 1
          %s2030 = scalar_lea.sflag [#allocation8], %s2029
          %s2031 = sand.u32 %s376, 1
          %s2032 = smul.addr %s2031, 32
          %s2033 = scalar_lea.vmem [#allocation15], %s2032
          %2034 = dma.done %s2030, 512
        $region116: #{tpu_custom_call.1} parent=111 // pred_fallthru
          _
      $region112: #{tpu_custom_call.1} parent=5 // pred_fallthru
        _
    $region6: #{tpu_custom_call.1} parent=1 // loop_footer
      %s43 = sadd.s32 1, %s39
    $region7: #{tpu_custom_call.1} parent=1 // loop_footer_branch
      %38 = sbr.rel target = $region3
    $region8: #{tpu_custom_call.1} parent=1 // loop_exit
      _
    %2035 = vsyncpa [#allocation7], 1
    %s2036 = scalar_lea.sflag [#allocation7], 1
    %2037 = vsyncpa %s2036, 1
    %2038 = vsyncpa [#allocation10], 1
    %2039 = vsyncpa [#allocation13], 1
    %2040 = vsyncpa [#allocation8], 1
    %s2041 = scalar_lea.sflag [#allocation8], 1
    %2042 = vsyncpa %s2041, 1

</llo_original>
